<compile_context>
chip_gen: v6e
topology: v6e:2x2x1
jax: 0.10.0
libtpu: 0.0.40
codegen_flags: <defaults>
</compile_context>

<pallas_src>
import functools

import jax
import jax.numpy as jnp
from jax.experimental import pallas as pl
from jax.experimental.pallas import tpu as pltpu

EPS = 1e-5


def bn_conv1x1_kernel(x_ref, gamma_ref, beta_ref, w_ref, o_ref, *, l_true):
    # x_ref:     (C, Lp)  input, channel-major; lanes >= l_true are zero padding
    # gamma_ref: (C, 1)   batchnorm scale
    # beta_ref:  (C, 1)   batchnorm shift
    # w_ref:     (Co, C)  1x1 conv weight
    # o_ref:     (Co, Lp) output (lane-dense, Lp multiple of 128)
    x = x_ref[...]                     # f32 (C, Lp)
    inv_l = 1.0 / l_true               # static Python constant

    # --- BatchNorm2d training-mode batch stats, single fused reduction pass ---
    s1 = jnp.sum(x, axis=1, keepdims=True)        # (C, 1)   zero pad adds nothing
    s2 = jnp.sum(x * x, axis=1, keepdims=True)    # (C, 1)
    mean = s1 * inv_l
    var = s2 * inv_l - mean * mean                # biased variance (training mode)
    scale = gamma_ref[...] * jax.lax.rsqrt(var + EPS)   # (C, 1)
    shift = beta_ref[...] - scale * mean                # (C, 1)

    w = w_ref[...]                                       # (Co, C)

    # Fold the BN shift into a per-output bias: bias = W @ (beta - scale*mean).
    bias = jnp.dot(
        w, shift,
        preferred_element_type=jnp.float32,
        precision=jax.lax.Precision.HIGHEST,
    )                                                    # (Co, 1)

    # Single elementwise pass over x (per-channel scale only); mean-subtract and
    # beta-add live entirely in `bias`.
    xs = x * scale                                       # (C, Lp)

    # 1x1 conv == matmul over the channel dim on the MXU.
    o_ref[...] = (
        jnp.dot(
            w, xs,
            preferred_element_type=jnp.float32,
            precision=jax.lax.Precision.HIGHEST,
        )
        + bias
    ).astype(o_ref.dtype)


def batchnorm_conv1x1(x_nchw, gamma, beta, weight):
    """x_nchw: (N, C, H, W) f32; gamma/beta: (C,); weight: (Co, C, 1, 1)."""
    n, c, h, w = x_nchw.shape
    co = weight.shape[0]
    l_true = n * h * w
    l_pad = max(128, ((l_true + 127) // 128) * 128)

    # NCHW -> (C, N*H*W).  For N == 1 this is a pure reshape (no HBM transpose).
    if n == 1:
        x2d = x_nchw.reshape(c, l_true)
    else:
        x2d = jnp.transpose(x_nchw, (1, 0, 2, 3)).reshape(c, l_true)

    # Pad the lane axis to a multiple of 128 -> unmasked full-vreg loads/stores.
    if l_pad != l_true:
        x2d = jnp.pad(x2d, ((0, 0), (0, l_pad - l_true)))

    gamma2 = gamma.reshape(c, 1).astype(jnp.float32)
    beta2 = beta.reshape(c, 1).astype(jnp.float32)
    w2d = weight.reshape(co, c).astype(jnp.float32)

    kernel = functools.partial(bn_conv1x1_kernel, l_true=float(l_true))

    out2d = pl.pallas_call(
        kernel,
        out_shape=jax.ShapeDtypeStruct((co, l_pad), jnp.float32),
        in_specs=[
            pl.BlockSpec(memory_space=pltpu.MemorySpace.VMEM),
            pl.BlockSpec(memory_space=pltpu.MemorySpace.VMEM),
            pl.BlockSpec(memory_space=pltpu.MemorySpace.VMEM),
            pl.BlockSpec(memory_space=pltpu.MemorySpace.VMEM),
        ],
        out_specs=pl.BlockSpec(memory_space=pltpu.MemorySpace.VMEM),
    )(x2d, gamma2, beta2, w2d)

    out2d = out2d[:, :l_true]
    if n == 1:
        return out2d.reshape(1, co, h, w)
    return jnp.transpose(out2d.reshape(co, n, h, w), (1, 0, 2, 3))

# TODO(synk): PyTorch BN's running_mean/running_var momentum update (a training-time
# side effect, not part of the forward output) is not emitted.


def _reference(x_nchw, gamma, beta, weight):
    mean = jnp.mean(x_nchw, axis=(0, 2, 3), keepdims=True)
    var = jnp.mean((x_nchw - mean) ** 2, axis=(0, 2, 3), keepdims=True)
    y = gamma[None, :, None, None] * (x_nchw - mean) / jnp.sqrt(var + EPS) \
        + beta[None, :, None, None]
    return jnp.einsum("oc,nchw->nohw", weight.reshape(weight.shape[0], -1), y)


if __name__ == "__main__":
    key = jax.random.PRNGKey(0)
    kx, kg, kb, kw = jax.random.split(key, 4)

    N, C, H, W = 1, 96, 7, 7
    CO = 96

    x = jax.random.normal(kx, (N, C, H, W), dtype=jnp.float32)
    gamma = 1.0 + 0.1 * jax.random.normal(kg, (C,), dtype=jnp.float32)
    beta = 0.1 * jax.random.normal(kb, (C,), dtype=jnp.float32)
    conv_w = jax.random.normal(kw, (CO, C, 1, 1), dtype=jnp.float32) * (1.0 / C) ** 0.5

    out = batchnorm_conv1x1(x, gamma, beta, conv_w)
    out = jax.block_until_ready(out)

    ref = _reference(x, gamma, beta, conv_w)
    assert out.shape == (N, CO, H, W)
    assert jnp.allclose(out, ref, rtol=1e-4, atol=1e-4)

    print("KERNEL_OK")
</pallas_src>

<mosaic_0001>
module attributes {stable_mosaic.version = 11 : i64} {
  func.func @bn_conv1x1_kernel(%arg0: memref<96x128xf32, #tpu.memory_space<vmem>>, %arg1: memref<96x1xf32, #tpu.memory_space<vmem>>, %arg2: memref<96x1xf32, #tpu.memory_space<vmem>>, %arg3: memref<96x96xf32, #tpu.memory_space<vmem>>, %arg4: memref<96x128xf32, #tpu.memory_space<vmem>>) attributes {dimension_semantics = [], scalar_prefetch = 0 : i64, scratch_operands = 0 : i64, tpu.core_type = #tpu.core_type<tc>} {
    %c0 = arith.constant 0 : index
    %c0_0 = arith.constant 0 : index
    %0 = vector.load %arg0[%c0, %c0_0] : memref<96x128xf32, #tpu.memory_space<vmem>>, vector<96x128xf32>
    %cst = arith.constant dense<0.000000e+00> : vector<96xf32>
    %1 = vector.multi_reduction <add>, %0, %cst [1] : vector<96x128xf32> to vector<96xf32>
    %2 = vector.shape_cast %1 : vector<96xf32> to vector<96x1xf32>
    %3 = arith.mulf %0, %0 : vector<96x128xf32>
    %cst_1 = arith.constant dense<0.000000e+00> : vector<96xf32>
    %4 = vector.multi_reduction <add>, %3, %cst_1 [1] : vector<96x128xf32> to vector<96xf32>
    %5 = vector.shape_cast %4 : vector<96xf32> to vector<96x1xf32>
    %cst_2 = arith.constant 0.0204081628 : f32
    %6 = vector.broadcast %cst_2 : f32 to vector<96x1xf32>
    %7 = arith.mulf %2, %6 : vector<96x1xf32>
    %cst_3 = arith.constant 0.0204081628 : f32
    %8 = vector.broadcast %cst_3 : f32 to vector<96x1xf32>
    %9 = arith.mulf %5, %8 : vector<96x1xf32>
    %10 = arith.mulf %7, %7 : vector<96x1xf32>
    %11 = arith.subf %9, %10 : vector<96x1xf32>
    %c0_4 = arith.constant 0 : index
    %c0_5 = arith.constant 0 : index
    %12 = vector.load %arg1[%c0_4, %c0_5] : memref<96x1xf32, #tpu.memory_space<vmem>>, vector<96x1xf32>
    %cst_6 = arith.constant 9.99999974E-6 : f32
    %13 = vector.broadcast %cst_6 : f32 to vector<96x1xf32>
    %14 = arith.addf %11, %13 : vector<96x1xf32>
    %15 = math.rsqrt %14 : vector<96x1xf32>
    %16 = arith.mulf %12, %15 : vector<96x1xf32>
    %c0_7 = arith.constant 0 : index
    %c0_8 = arith.constant 0 : index
    %17 = vector.load %arg2[%c0_7, %c0_8] : memref<96x1xf32, #tpu.memory_space<vmem>>, vector<96x1xf32>
    %18 = arith.mulf %16, %7 : vector<96x1xf32>
    %19 = arith.subf %17, %18 : vector<96x1xf32>
    %c0_9 = arith.constant 0 : index
    %c0_10 = arith.constant 0 : index
    %20 = vector.load %arg3[%c0_9, %c0_10] : memref<96x96xf32, #tpu.memory_space<vmem>>, vector<96x96xf32>
    %cst_11 = arith.constant dense<0.000000e+00> : vector<96x1xf32>
    %21 = tpu.matmul %20, %19, %cst_11 {dimension_numbers = #tpu.dot_dimension_numbers<[1], [0], [0], [1], [0, 0, 1, 1], [], []>, precision = #tpu.contract_precision<fp32>} : vector<96x96xf32>, vector<96x1xf32>, vector<96x1xf32> -> vector<96x1xf32>
    %22 = vector.broadcast %16 : vector<96x1xf32> to vector<96x128xf32>
    %23 = arith.mulf %0, %22 : vector<96x128xf32>
    %cst_12 = arith.constant dense<0.000000e+00> : vector<96x128xf32>
    %24 = tpu.matmul %20, %23, %cst_12 {dimension_numbers = #tpu.dot_dimension_numbers<[1], [0], [0], [1], [0, 0, 1, 1], [], []>, precision = #tpu.contract_precision<fp32>} : vector<96x96xf32>, vector<96x128xf32>, vector<96x128xf32> -> vector<96x128xf32>
    %25 = vector.broadcast %21 : vector<96x1xf32> to vector<96x128xf32>
    %26 = arith.addf %24, %25 : vector<96x128xf32>
    %c0_13 = arith.constant 0 : index
    %c0_14 = arith.constant 0 : index
    %27 = vector.load %arg4[%c0_13, %c0_14] : memref<96x128xf32, #tpu.memory_space<vmem>>, vector<96x128xf32>
    tpu.vector_store %arg4[%c0_13, %c0_14], %26 {strides = array<i32>} : memref<96x128xf32, #tpu.memory_space<vmem>>, vector<96x128xf32>,
    return
  }
}

</mosaic_0001>

<llo_original>
// kernel: tpu_custom_call.1
$region0: #{tpu_custom_call.1}
  #allocation0 [shape = 'u32[]', space=smem, size = 0x4, offset = 0x4, fixed_abs, tag = 'smem constant byte address 0x4 - core index']
  #allocation1 [shape = 'u32[144,128]{1,0:T(1,128)}', space=vmem, size = 0x12000, scoped, tag = 'internal scratch']
  %s0 = inlined_call_operand.vmem [shape: f32[96,128], index: 0, kind: input, shape index: {}]
  %s1 = inlined_call_operand.vmem [shape: f32[96,1], index: 1, kind: input, shape index: {}]
  %s2 = inlined_call_operand.vmem [shape: f32[96,1], index: 2, kind: input, shape index: {}]
  %s3 = inlined_call_operand.vmem [shape: f32[96,96], index: 3, kind: input, shape index: {}]
  %s4 = inlined_call_operand.hbm [shape: f32[96,128], index: 4, kind: output, shape index: {}]
  %s5 = sld [smem:[#allocation0]]
  $region26: #{tpu_custom_call.1} parent=0
    _
  %s7 = ssub.s32 1, %s5
  %s8 = scalar_select 0, %s7, %s5
  $region1: #{tpu_custom_call.1} parent=0
    #allocation2 [shape = 'u8[49152]{0}', space=vmem, size = 0xc000, scoped, tag = 'output window, operand 0, single buffered']
    #allocation3 [shape = 's32[1]{0}', space=sflag, size = 0x4, scoped, tag = 'scoped memory for tpu_custom_call.1']
    %9 = vsyncpa [#allocation3], 0
    // Predicated region
    $region2: #{tpu_custom_call.1} parent=1 // pred_check
      _
    $region3: #{tpu_custom_call.1} parent=1 // pred_check_branch
      %11 = sbr.rel (0) target = $region5
    $region4: #{tpu_custom_call.1} parent=1 // pred_region
      _
    $region5: #{tpu_custom_call.1} parent=1 // pred_fallthru
      _
    // Predicated region
    $region6: #{tpu_custom_call.1} parent=1 // pred_check
      _
    $region7: #{tpu_custom_call.1} parent=1 // pred_check_branch
      %13 = sbr.rel (0) target = $region9
    $region8: #{tpu_custom_call.1} parent=1 // pred_region
      _
    $region9: #{tpu_custom_call.1} parent=1 // pred_fallthru
      _
    // Predicated region
    $region10: #{tpu_custom_call.1} parent=1 // pred_check
      _
    $region11: #{tpu_custom_call.1} parent=1 // pred_check_branch
      %15 = sbr.rel (0) target = $region13
    $region12: #{tpu_custom_call.1} parent=1 // pred_region
      _
    $region13: #{tpu_custom_call.1} parent=1 // pred_fallthru
      _
    // Predicated region
    $region14: #{tpu_custom_call.1} parent=1 // pred_check
      _
    $region15: #{tpu_custom_call.1} parent=1 // pred_check_branch
      %17 = sbr.rel (0) target = $region17
    $region16: #{tpu_custom_call.1} parent=1 // pred_region
      _
    $region17: #{tpu_custom_call.1} parent=1 // pred_fallthru
      _
    %v18 = vld [vmem:[%s0] sm:$0xff]
    %v19 = vld [vmem:[%s0 + $0x8] sm:$0xff]
    %v20 = vld [vmem:[%s0 + $0x10] sm:$0xff]
    %v21 = vld [vmem:[%s0 + $0x18] sm:$0xff]
    %v22 = vld [vmem:[%s0 + $0x20] sm:$0xff]
    %v23 = vld [vmem:[%s0 + $0x28] sm:$0xff]
    %v24 = vld [vmem:[%s0 + $0x30] sm:$0xff]
    %v25 = vld [vmem:[%s0 + $0x38] sm:$0xff]
    %v26 = vld [vmem:[%s0 + $0x40] sm:$0xff]
    %v27 = vld [vmem:[%s0 + $0x48] sm:$0xff]
    %v28 = vld [vmem:[%s0 + $0x50] sm:$0xff]
    %v29 = vld [vmem:[%s0 + $0x58] sm:$0xff]
    %30 = vadd.xlane.f32.xlu0 %v18
    %v31 = vpop.xlane.xlu0 %30
    %32 = vadd.xlane.f32.xlu0 %v19
    %v33 = vpop.xlane.xlu0 %32
    %34 = vadd.xlane.f32.xlu0 %v20
    %v35 = vpop.xlane.xlu0 %34
    %36 = vadd.xlane.f32.xlu0 %v21
    %v37 = vpop.xlane.xlu0 %36
    %38 = vadd.xlane.f32.xlu0 %v22
    %v39 = vpop.xlane.xlu0 %38
    %40 = vadd.xlane.f32.xlu0 %v23
    %v41 = vpop.xlane.xlu0 %40
    %42 = vadd.xlane.f32.xlu0 %v24
    %v43 = vpop.xlane.xlu0 %42
    %44 = vadd.xlane.f32.xlu0 %v25
    %v45 = vpop.xlane.xlu0 %44
    %46 = vadd.xlane.f32.xlu0 %v26
    %v47 = vpop.xlane.xlu0 %46
    %48 = vadd.xlane.f32.xlu0 %v27
    %v49 = vpop.xlane.xlu0 %48
    %50 = vadd.xlane.f32.xlu0 %v28
    %v51 = vpop.xlane.xlu0 %50
    %52 = vadd.xlane.f32.xlu0 %v29
    %v53 = vpop.xlane.xlu0 %52
    %v54 = vmul.f32 %v18, %v18
    %v55 = vmul.f32 %v19, %v19
    %v56 = vmul.f32 %v20, %v20
    %v57 = vmul.f32 %v21, %v21
    %v58 = vmul.f32 %v22, %v22
    %v59 = vmul.f32 %v23, %v23
    %v60 = vmul.f32 %v24, %v24
    %v61 = vmul.f32 %v25, %v25
    %v62 = vmul.f32 %v26, %v26
    %v63 = vmul.f32 %v27, %v27
    %v64 = vmul.f32 %v28, %v28
    %v65 = vmul.f32 %v29, %v29
    %66 = vadd.xlane.f32.xlu0 %v54
    %v67 = vpop.xlane.xlu0 %66
    %68 = vadd.xlane.f32.xlu0 %v55
    %v69 = vpop.xlane.xlu0 %68
    %70 = vadd.xlane.f32.xlu0 %v56
    %v71 = vpop.xlane.xlu0 %70
    %72 = vadd.xlane.f32.xlu0 %v57
    %v73 = vpop.xlane.xlu0 %72
    %74 = vadd.xlane.f32.xlu0 %v58
    %v75 = vpop.xlane.xlu0 %74
    %76 = vadd.xlane.f32.xlu0 %v59
    %v77 = vpop.xlane.xlu0 %76
    %78 = vadd.xlane.f32.xlu0 %v60
    %v79 = vpop.xlane.xlu0 %78
    %80 = vadd.xlane.f32.xlu0 %v61
    %v81 = vpop.xlane.xlu0 %80
    %82 = vadd.xlane.f32.xlu0 %v62
    %v83 = vpop.xlane.xlu0 %82
    %84 = vadd.xlane.f32.xlu0 %v63
    %v85 = vpop.xlane.xlu0 %84
    %86 = vadd.xlane.f32.xlu0 %v64
    %v87 = vpop.xlane.xlu0 %86
    %88 = vadd.xlane.f32.xlu0 %v65
    %v89 = vpop.xlane.xlu0 %88
    %v90 = vmul.f32 %v31, 0.020408163
    %v91 = vmul.f32 %v33, 0.020408163
    %v92 = vmul.f32 %v35, 0.020408163
    %v93 = vmul.f32 %v37, 0.020408163
    %v94 = vmul.f32 %v39, 0.020408163
    %v95 = vmul.f32 %v41, 0.020408163
    %v96 = vmul.f32 %v43, 0.020408163
    %v97 = vmul.f32 %v45, 0.020408163
    %v98 = vmul.f32 %v47, 0.020408163
    %v99 = vmul.f32 %v49, 0.020408163
    %v100 = vmul.f32 %v51, 0.020408163
    %v101 = vmul.f32 %v53, 0.020408163
    %v102 = vmul.f32 %v67, 0.020408163
    %v103 = vmul.f32 %v69, 0.020408163
    %v104 = vmul.f32 %v71, 0.020408163
    %v105 = vmul.f32 %v73, 0.020408163
    %v106 = vmul.f32 %v75, 0.020408163
    %v107 = vmul.f32 %v77, 0.020408163
    %v108 = vmul.f32 %v79, 0.020408163
    %v109 = vmul.f32 %v81, 0.020408163
    %v110 = vmul.f32 %v83, 0.020408163
    %v111 = vmul.f32 %v85, 0.020408163
    %v112 = vmul.f32 %v87, 0.020408163
    %v113 = vmul.f32 %v89, 0.020408163
    %v114 = vmul.f32 %v90, %v90
    %v115 = vmul.f32 %v91, %v91
    %v116 = vmul.f32 %v92, %v92
    %v117 = vmul.f32 %v93, %v93
    %v118 = vmul.f32 %v94, %v94
    %v119 = vmul.f32 %v95, %v95
    %v120 = vmul.f32 %v96, %v96
    %v121 = vmul.f32 %v97, %v97
    %v122 = vmul.f32 %v98, %v98
    %v123 = vmul.f32 %v99, %v99
    %v124 = vmul.f32 %v100, %v100
    %v125 = vmul.f32 %v101, %v101
    %v126 = vsub.f32 %v102, %v114
    %v127 = vsub.f32 %v103, %v115
    %v128 = vsub.f32 %v104, %v116
    %v129 = vsub.f32 %v105, %v117
    %v130 = vsub.f32 %v106, %v118
    %v131 = vsub.f32 %v107, %v119
    %v132 = vsub.f32 %v108, %v120
    %v133 = vsub.f32 %v109, %v121
    %v134 = vsub.f32 %v110, %v122
    %v135 = vsub.f32 %v111, %v123
    %v136 = vsub.f32 %v112, %v124
    %v137 = vsub.f32 %v113, %v125
    %v138 = vld [vmem:[%s1] sm:$0xff]
    %v139 = vld [vmem:[%s1 + $0x8] sm:$0xff]
    %v140 = vld [vmem:[%s1 + $0x10] sm:$0xff]
    %v141 = vld [vmem:[%s1 + $0x18] sm:$0xff]
    %v142 = vld [vmem:[%s1 + $0x20] sm:$0xff]
    %v143 = vld [vmem:[%s1 + $0x28] sm:$0xff]
    %v144 = vld [vmem:[%s1 + $0x30] sm:$0xff]
    %v145 = vld [vmem:[%s1 + $0x38] sm:$0xff]
    %v146 = vld [vmem:[%s1 + $0x40] sm:$0xff]
    %v147 = vld [vmem:[%s1 + $0x48] sm:$0xff]
    %v148 = vld [vmem:[%s1 + $0x50] sm:$0xff]
    %v149 = vld [vmem:[%s1 + $0x58] sm:$0xff]
    %v150 = vadd.f32 %v126, 1e-05
    %v151 = vadd.f32 %v127, 1e-05
    %v152 = vadd.f32 %v128, 1e-05
    %v153 = vadd.f32 %v129, 1e-05
    %v154 = vadd.f32 %v130, 1e-05
    %v155 = vadd.f32 %v131, 1e-05
    %v156 = vadd.f32 %v132, 1e-05
    %v157 = vadd.f32 %v133, 1e-05
    %v158 = vadd.f32 %v134, 1e-05
    %v159 = vadd.f32 %v135, 1e-05
    %v160 = vadd.f32 %v136, 1e-05
    %v161 = vadd.f32 %v137, 1e-05
    %v162 = vrsqrt.pop %v150
    %v163 = vrsqrt.pop %v151
    %v164 = vrsqrt.pop %v152
    %v165 = vrsqrt.pop %v153
    %v166 = vrsqrt.pop %v154
    %v167 = vrsqrt.pop %v155
    %v168 = vrsqrt.pop %v156
    %v169 = vrsqrt.pop %v157
    %v170 = vrsqrt.pop %v158
    %v171 = vrsqrt.pop %v159
    %v172 = vrsqrt.pop %v160
    %v173 = vrsqrt.pop %v161
    %v174 = vmul.f32 %v138, %v162
    %v175 = vmul.f32 %v139, %v163
    %v176 = vmul.f32 %v140, %v164
    %v177 = vmul.f32 %v141, %v165
    %v178 = vmul.f32 %v142, %v166
    %v179 = vmul.f32 %v143, %v167
    %v180 = vmul.f32 %v144, %v168
    %v181 = vmul.f32 %v145, %v169
    %v182 = vmul.f32 %v146, %v170
    %v183 = vmul.f32 %v147, %v171
    %v184 = vmul.f32 %v148, %v172
    %v185 = vmul.f32 %v149, %v173
    %v186 = vld [vmem:[%s2] sm:$0xff]
    %v187 = vld [vmem:[%s2 + $0x8] sm:$0xff]
    %v188 = vld [vmem:[%s2 + $0x10] sm:$0xff]
    %v189 = vld [vmem:[%s2 + $0x18] sm:$0xff]
    %v190 = vld [vmem:[%s2 + $0x20] sm:$0xff]
    %v191 = vld [vmem:[%s2 + $0x28] sm:$0xff]
    %v192 = vld [vmem:[%s2 + $0x30] sm:$0xff]
    %v193 = vld [vmem:[%s2 + $0x38] sm:$0xff]
    %v194 = vld [vmem:[%s2 + $0x40] sm:$0xff]
    %v195 = vld [vmem:[%s2 + $0x48] sm:$0xff]
    %v196 = vld [vmem:[%s2 + $0x50] sm:$0xff]
    %v197 = vld [vmem:[%s2 + $0x58] sm:$0xff]
    %v198 = vmul.f32 %v174, %v90
    %v199 = vmul.f32 %v175, %v91
    %v200 = vmul.f32 %v176, %v92
    %v201 = vmul.f32 %v177, %v93
    %v202 = vmul.f32 %v178, %v94
    %v203 = vmul.f32 %v179, %v95
    %v204 = vmul.f32 %v180, %v96
    %v205 = vmul.f32 %v181, %v97
    %v206 = vmul.f32 %v182, %v98
    %v207 = vmul.f32 %v183, %v99
    %v208 = vmul.f32 %v184, %v100
    %v209 = vmul.f32 %v185, %v101
    %v210 = vsub.f32 %v186, %v198
    %v211 = vsub.f32 %v187, %v199
    %v212 = vsub.f32 %v188, %v200
    %v213 = vsub.f32 %v189, %v201
    %v214 = vsub.f32 %v190, %v202
    %v215 = vsub.f32 %v191, %v203
    %v216 = vsub.f32 %v192, %v204
    %v217 = vsub.f32 %v193, %v205
    %v218 = vsub.f32 %v194, %v206
    %v219 = vsub.f32 %v195, %v207
    %v220 = vsub.f32 %v196, %v208
    %v221 = vsub.f32 %v197, %v209
    %v222 = vld [vmem:[%s3] sm:$0xff]
    %v223 = vld [vmem:[%s3 + $0x8] sm:$0xff]
    %v224 = vld [vmem:[%s3 + $0x10] sm:$0xff]
    %v225 = vld [vmem:[%s3 + $0x18] sm:$0xff]
    %v226 = vld [vmem:[%s3 + $0x20] sm:$0xff]
    %v227 = vld [vmem:[%s3 + $0x28] sm:$0xff]
    %v228 = vld [vmem:[%s3 + $0x30] sm:$0xff]
    %v229 = vld [vmem:[%s3 + $0x38] sm:$0xff]
    %v230 = vld [vmem:[%s3 + $0x40] sm:$0xff]
    %v231 = vld [vmem:[%s3 + $0x48] sm:$0xff]
    %v232 = vld [vmem:[%s3 + $0x50] sm:$0xff]
    %v233 = vld [vmem:[%s3 + $0x58] sm:$0xff]
    %vm234 = vcmask 785408
    %v236 = vsel %vm234, %v222, 0
    %v239 = vsel %vm234, %v223, 0
    %v242 = vsel %vm234, %v224, 0
    %v245 = vsel %vm234, %v225, 0
    %v248 = vsel %vm234, %v226, 0
    %v251 = vsel %vm234, %v227, 0
    %v254 = vsel %vm234, %v228, 0
    %v257 = vsel %vm234, %v229, 0
    %v260 = vsel %vm234, %v230, 0
    %v263 = vsel %vm234, %v231, 0
    %v266 = vsel %vm234, %v232, 0
    %v269 = vsel %vm234, %v233, 0
    %271 = vmatprep.subr.mxu0 0.0
    %272 = vmatpush1.msra.mxu0 0.0
    %273 = vmatprep.subr.mxu0 0.0
    %274 = vmatpush1.msra.mxu0 0.0
    %275 = vmatprep.subr.mxu0 0.0
    %276 = vmatpush1.msra.mxu0 0.0
    %277 = vmatprep.subr.mxu0 0.0
    %278 = vmatpush1.msra.mxu0 0.0
    %279 = vmatprep.subr.mxu0 0.0
    %v280 = vand.u32 %v221, 4294901760
    %281 = vmatpush1.msra.mxu0 %v280
    %282 = vmatprep.subr.mxu0 0.0
    %v283 = vand.u32 %v220, 4294901760
    %284 = vmatpush1.msra.mxu0 %v283
    %285 = vmatprep.subr.mxu0 0.0
    %v286 = vand.u32 %v219, 4294901760
    %287 = vmatpush1.msra.mxu0 %v286
    %288 = vmatprep.subr.mxu0 0.0
    %v289 = vand.u32 %v218, 4294901760
    %290 = vmatpush1.msra.mxu0 %v289
    %291 = vmatprep.subr.mxu0 0.0
    %v292 = vand.u32 %v217, 4294901760
    %293 = vmatpush1.msra.mxu0 %v292
    %294 = vmatprep.subr.mxu0 0.0
    %v295 = vand.u32 %v216, 4294901760
    %296 = vmatpush1.msra.mxu0 %v295
    %297 = vmatprep.subr.mxu0 0.0
    %v298 = vand.u32 %v215, 4294901760
    %299 = vmatpush1.msra.mxu0 %v298
    %300 = vmatprep.subr.mxu0 0.0
    %v301 = vand.u32 %v214, 4294901760
    %302 = vmatpush1.msra.mxu0 %v301
    %303 = vmatprep.subr.mxu0 0.0
    %v304 = vand.u32 %v213, 4294901760
    %305 = vmatpush1.msra.mxu0 %v304
    %306 = vmatprep.subr.mxu0 0.0
    %v307 = vand.u32 %v212, 4294901760
    %308 = vmatpush1.msra.mxu0 %v307
    %309 = vmatprep.subr.mxu0 0.0
    %v310 = vand.u32 %v211, 4294901760
    %311 = vmatpush1.msra.mxu0 %v310
    %312 = vmatprep.subr.mxu0 0.0
    %v313 = vand.u32 %v210, 4294901760
    %314 = vmatpush1.msra.mxu0 %v313
    %315 = vmatprep.subr.mxu0 0.0
    %316 = vmatpush2.msra.mxu0 0.0
    %317 = vmatprep.subr.mxu0 0.0
    %318 = vmatpush2.msra.mxu0 0.0
    %319 = vmatprep.subr.mxu0 0.0
    %320 = vmatpush2.msra.mxu0 0.0
    %321 = vmatprep.subr.mxu0 0.0
    %322 = vmatpush2.msra.mxu0 0.0
    %323 = vmatprep.subr.mxu0 0.0
    %324 = vmatpush2.msra.mxu0 0.0
    %325 = vmatprep.subr.mxu0 0.0
    %326 = vmatpush2.msra.mxu0 0.0
    %327 = vmatprep.subr.mxu0 0.0
    %328 = vmatpush2.msra.mxu0 0.0
    %329 = vmatprep.subr.mxu0 0.0
    %330 = vmatpush2.msra.mxu0 0.0
    %331 = vmatprep.subr.mxu0 0.0
    %332 = vmatpush2.msra.mxu0 0.0
    %333 = vmatprep.subr.mxu0 0.0
    %334 = vmatpush2.msra.mxu0 0.0
    %335 = vmatprep.subr.mxu0 0.0
    %336 = vmatpush2.msra.mxu0 0.0
    %337 = vmatprep.subr.mxu0 0.0
    %338 = vmatpush2.msra.mxu0 0.0
    %339 = vmatprep.subr.mxu0 0.0
    %340 = vmatpush2.msra.mxu0 0.0
    %341 = vmatprep.subr.mxu0 0.0
    %342 = vmatpush2.msra.mxu0 0.0
    %343 = vmatprep.subr.mxu0 0.0
    %344 = vmatpush2.msra.mxu0 0.0
    %345 = vmatprep.subr.mxu0 0.0
    %346 = vmatpush2.msra.mxu0 0.0
    %347 = vmatprep.mubr.f32.mxu0 0.0
    %v348 = vand.u32 %v236, 4294901760
    %v349 = vsub.f32 %v236, %v348
    %v350 = vand.u32 %v349, 4294901760
    %v351 = vsub.f32 %v349, %v350
    %v352 = vand.u32 %v351, 4294901760
    %353 = vmatmul.mubr.f32.gmra.mxu0 %v352
    %v354 = vpop.f32.mrf.mxu0
    %v355 = vadd.f32 0.0, %v354
    %v356 = vpop.f32.mrf.mxu0
    %357 = vmatprep.mubr.f32.mxu0 0.0
    %v358 = vand.u32 %v239, 4294901760
    %v359 = vsub.f32 %v239, %v358
    %v360 = vand.u32 %v359, 4294901760
    %v361 = vsub.f32 %v359, %v360
    %v362 = vand.u32 %v361, 4294901760
    %363 = vmatmul.mubr.f32.gmra.mxu0 %v362
    %v364 = vpop.f32.mrf.mxu0
    %v365 = vadd.f32 0.0, %v364
    %v366 = vpop.f32.mrf.mxu0
    %367 = vmatprep.mubr.f32.mxu0 0.0
    %v368 = vand.u32 %v242, 4294901760
    %v369 = vsub.f32 %v242, %v368
    %v370 = vand.u32 %v369, 4294901760
    %v371 = vsub.f32 %v369, %v370
    %v372 = vand.u32 %v371, 4294901760
    %373 = vmatmul.mubr.f32.gmra.mxu0 %v372
    %v374 = vpop.f32.mrf.mxu0
    %v375 = vadd.f32 0.0, %v374
    %v376 = vpop.f32.mrf.mxu0
    %377 = vmatprep.mubr.f32.mxu0 0.0
    %v378 = vand.u32 %v245, 4294901760
    %v379 = vsub.f32 %v245, %v378
    %v380 = vand.u32 %v379, 4294901760
    %v381 = vsub.f32 %v379, %v380
    %v382 = vand.u32 %v381, 4294901760
    %383 = vmatmul.mubr.f32.gmra.mxu0 %v382
    %v384 = vpop.f32.mrf.mxu0
    %v385 = vadd.f32 0.0, %v384
    %v386 = vpop.f32.mrf.mxu0
    %387 = vmatprep.mubr.f32.mxu0 0.0
    %v388 = vand.u32 %v248, 4294901760
    %v389 = vsub.f32 %v248, %v388
    %v390 = vand.u32 %v389, 4294901760
    %v391 = vsub.f32 %v389, %v390
    %v392 = vand.u32 %v391, 4294901760
    %393 = vmatmul.mubr.f32.gmra.mxu0 %v392
    %v394 = vpop.f32.mrf.mxu0
    %v395 = vadd.f32 0.0, %v394
    %v396 = vpop.f32.mrf.mxu0
    %397 = vmatprep.mubr.f32.mxu0 0.0
    %v398 = vand.u32 %v251, 4294901760
    %v399 = vsub.f32 %v251, %v398
    %v400 = vand.u32 %v399, 4294901760
    %v401 = vsub.f32 %v399, %v400
    %v402 = vand.u32 %v401, 4294901760
    %403 = vmatmul.mubr.f32.gmra.mxu0 %v402
    %v404 = vpop.f32.mrf.mxu0
    %v405 = vadd.f32 0.0, %v404
    %v406 = vpop.f32.mrf.mxu0
    %407 = vmatprep.mubr.f32.mxu0 0.0
    %v408 = vand.u32 %v254, 4294901760
    %v409 = vsub.f32 %v254, %v408
    %v410 = vand.u32 %v409, 4294901760
    %v411 = vsub.f32 %v409, %v410
    %v412 = vand.u32 %v411, 4294901760
    %413 = vmatmul.mubr.f32.gmra.mxu0 %v412
    %v414 = vpop.f32.mrf.mxu0
    %v415 = vadd.f32 0.0, %v414
    %v416 = vpop.f32.mrf.mxu0
    %417 = vmatprep.mubr.f32.mxu0 0.0
    %v418 = vand.u32 %v257, 4294901760
    %v419 = vsub.f32 %v257, %v418
    %v420 = vand.u32 %v419, 4294901760
    %v421 = vsub.f32 %v419, %v420
    %v422 = vand.u32 %v421, 4294901760
    %423 = vmatmul.mubr.f32.gmra.mxu0 %v422
    %v424 = vpop.f32.mrf.mxu0
    %v425 = vadd.f32 0.0, %v424
    %v426 = vpop.f32.mrf.mxu0
    %427 = vmatprep.mubr.f32.mxu0 0.0
    %v428 = vand.u32 %v260, 4294901760
    %v429 = vsub.f32 %v260, %v428
    %v430 = vand.u32 %v429, 4294901760
    %v431 = vsub.f32 %v429, %v430
    %v432 = vand.u32 %v431, 4294901760
    %433 = vmatmul.mubr.f32.gmra.mxu0 %v432
    %v434 = vpop.f32.mrf.mxu0
    %v435 = vadd.f32 0.0, %v434
    %v436 = vpop.f32.mrf.mxu0
    %437 = vmatprep.mubr.f32.mxu0 0.0
    %v438 = vand.u32 %v263, 4294901760
    %v439 = vsub.f32 %v263, %v438
    %v440 = vand.u32 %v439, 4294901760
    %v441 = vsub.f32 %v439, %v440
    %v442 = vand.u32 %v441, 4294901760
    %443 = vmatmul.mubr.f32.gmra.mxu0 %v442
    %v444 = vpop.f32.mrf.mxu0
    %v445 = vadd.f32 0.0, %v444
    %v446 = vpop.f32.mrf.mxu0
    %447 = vmatprep.mubr.f32.mxu0 0.0
    %v448 = vand.u32 %v266, 4294901760
    %v449 = vsub.f32 %v266, %v448
    %v450 = vand.u32 %v449, 4294901760
    %v451 = vsub.f32 %v449, %v450
    %v452 = vand.u32 %v451, 4294901760
    %453 = vmatmul.mubr.f32.gmra.mxu0 %v452
    %v454 = vpop.f32.mrf.mxu0
    %v455 = vadd.f32 0.0, %v454
    %v456 = vpop.f32.mrf.mxu0
    %457 = vmatprep.mubr.f32.mxu0 0.0
    %v458 = vand.u32 %v269, 4294901760
    %v459 = vsub.f32 %v269, %v458
    %v460 = vand.u32 %v459, 4294901760
    %v461 = vsub.f32 %v459, %v460
    %v462 = vand.u32 %v461, 4294901760
    %463 = vmatmul.mubr.f32.gmra.mxu0 %v462
    %v464 = vpop.f32.mrf.mxu0
    %v465 = vadd.f32 0.0, %v464
    %v466 = vpop.f32.mrf.mxu0
    %467 = vdwg.mxu0
    %468 = vmatprep.subr.mxu0 0.0
    %469 = vmatpush1.msra.mxu0 0.0
    %470 = vmatprep.subr.mxu0 0.0
    %471 = vmatpush1.msra.mxu0 0.0
    %472 = vmatprep.subr.mxu0 0.0
    %473 = vmatpush1.msra.mxu0 0.0
    %474 = vmatprep.subr.mxu0 0.0
    %475 = vmatpush1.msra.mxu0 0.0
    %476 = vmatprep.subr.mxu0 0.0
    %v477 = vand.u32 %v221, 4294901760
    %v478 = vsub.f32 %v221, %v477
    %v479 = vand.u32 %v478, 4294901760
    %v480 = vsub.f32 %v478, %v479
    %v481 = vand.u32 %v480, 4294901760
    %482 = vmatpush1.msra.mxu0 %v481
    %483 = vmatprep.subr.mxu0 0.0
    %v484 = vand.u32 %v220, 4294901760
    %v485 = vsub.f32 %v220, %v484
    %v486 = vand.u32 %v485, 4294901760
    %v487 = vsub.f32 %v485, %v486
    %v488 = vand.u32 %v487, 4294901760
    %489 = vmatpush1.msra.mxu0 %v488
    %490 = vmatprep.subr.mxu0 0.0
    %v491 = vand.u32 %v219, 4294901760
    %v492 = vsub.f32 %v219, %v491
    %v493 = vand.u32 %v492, 4294901760
    %v494 = vsub.f32 %v492, %v493
    %v495 = vand.u32 %v494, 4294901760
    %496 = vmatpush1.msra.mxu0 %v495
    %497 = vmatprep.subr.mxu0 0.0
    %v498 = vand.u32 %v218, 4294901760
    %v499 = vsub.f32 %v218, %v498
    %v500 = vand.u32 %v499, 4294901760
    %v501 = vsub.f32 %v499, %v500
    %v502 = vand.u32 %v501, 4294901760
    %503 = vmatpush1.msra.mxu0 %v502
    %504 = vmatprep.subr.mxu0 0.0
    %v505 = vand.u32 %v217, 4294901760
    %v506 = vsub.f32 %v217, %v505
    %v507 = vand.u32 %v506, 4294901760
    %v508 = vsub.f32 %v506, %v507
    %v509 = vand.u32 %v508, 4294901760
    %510 = vmatpush1.msra.mxu0 %v509
    %511 = vmatprep.subr.mxu0 0.0
    %v512 = vand.u32 %v216, 4294901760
    %v513 = vsub.f32 %v216, %v512
    %v514 = vand.u32 %v513, 4294901760
    %v515 = vsub.f32 %v513, %v514
    %v516 = vand.u32 %v515, 4294901760
    %517 = vmatpush1.msra.mxu0 %v516
    %518 = vmatprep.subr.mxu0 0.0
    %v519 = vand.u32 %v215, 4294901760
    %v520 = vsub.f32 %v215, %v519
    %v521 = vand.u32 %v520, 4294901760
    %v522 = vsub.f32 %v520, %v521
    %v523 = vand.u32 %v522, 4294901760
    %524 = vmatpush1.msra.mxu0 %v523
    %525 = vmatprep.subr.mxu0 0.0
    %v526 = vand.u32 %v214, 4294901760
    %v527 = vsub.f32 %v214, %v526
    %v528 = vand.u32 %v527, 4294901760
    %v529 = vsub.f32 %v527, %v528
    %v530 = vand.u32 %v529, 4294901760
    %531 = vmatpush1.msra.mxu0 %v530
    %532 = vmatprep.subr.mxu0 0.0
    %v533 = vand.u32 %v213, 4294901760
    %v534 = vsub.f32 %v213, %v533
    %v535 = vand.u32 %v534, 4294901760
    %v536 = vsub.f32 %v534, %v535
    %v537 = vand.u32 %v536, 4294901760
    %538 = vmatpush1.msra.mxu0 %v537
    %539 = vmatprep.subr.mxu0 0.0
    %v540 = vand.u32 %v212, 4294901760
    %v541 = vsub.f32 %v212, %v540
    %v542 = vand.u32 %v541, 4294901760
    %v543 = vsub.f32 %v541, %v542
    %v544 = vand.u32 %v543, 4294901760
    %545 = vmatpush1.msra.mxu0 %v544
    %546 = vmatprep.subr.mxu0 0.0
    %v547 = vand.u32 %v211, 4294901760
    %v548 = vsub.f32 %v211, %v547
    %v549 = vand.u32 %v548, 4294901760
    %v550 = vsub.f32 %v548, %v549
    %v551 = vand.u32 %v550, 4294901760
    %552 = vmatpush1.msra.mxu0 %v551
    %553 = vmatprep.subr.mxu0 0.0
    %v554 = vand.u32 %v210, 4294901760
    %v555 = vsub.f32 %v210, %v554
    %v556 = vand.u32 %v555, 4294901760
    %v557 = vsub.f32 %v555, %v556
    %v558 = vand.u32 %v557, 4294901760
    %559 = vmatpush1.msra.mxu0 %v558
    %560 = vmatprep.subr.mxu0 0.0
    %561 = vmatpush2.msra.mxu0 0.0
    %562 = vmatprep.subr.mxu0 0.0
    %563 = vmatpush2.msra.mxu0 0.0
    %564 = vmatprep.subr.mxu0 0.0
    %565 = vmatpush2.msra.mxu0 0.0
    %566 = vmatprep.subr.mxu0 0.0
    %567 = vmatpush2.msra.mxu0 0.0
    %568 = vmatprep.subr.mxu0 0.0
    %569 = vmatpush2.msra.mxu0 0.0
    %570 = vmatprep.subr.mxu0 0.0
    %571 = vmatpush2.msra.mxu0 0.0
    %572 = vmatprep.subr.mxu0 0.0
    %573 = vmatpush2.msra.mxu0 0.0
    %574 = vmatprep.subr.mxu0 0.0
    %575 = vmatpush2.msra.mxu0 0.0
    %576 = vmatprep.subr.mxu0 0.0
    %577 = vmatpush2.msra.mxu0 0.0
    %578 = vmatprep.subr.mxu0 0.0
    %579 = vmatpush2.msra.mxu0 0.0
    %580 = vmatprep.subr.mxu0 0.0
    %581 = vmatpush2.msra.mxu0 0.0
    %582 = vmatprep.subr.mxu0 0.0
    %583 = vmatpush2.msra.mxu0 0.0
    %584 = vmatprep.subr.mxu0 0.0
    %585 = vmatpush2.msra.mxu0 0.0
    %586 = vmatprep.subr.mxu0 0.0
    %587 = vmatpush2.msra.mxu0 0.0
    %588 = vmatprep.subr.mxu0 0.0
    %589 = vmatpush2.msra.mxu0 0.0
    %590 = vmatprep.subr.mxu0 0.0
    %591 = vmatpush2.msra.mxu0 0.0
    %592 = vmatprep.mubr.f32.mxu0 0.0
    %v593 = vand.u32 %v236, 4294901760
    %594 = vmatmul.mubr.f32.gmra.mxu0 %v593
    %v595 = vpop.f32.mrf.mxu0
    %v596 = vadd.f32 %v355, %v595
    %v597 = vpop.f32.mrf.mxu0
    %598 = vmatprep.mubr.f32.mxu0 0.0
    %v599 = vand.u32 %v239, 4294901760
    %600 = vmatmul.mubr.f32.gmra.mxu0 %v599
    %v601 = vpop.f32.mrf.mxu0
    %v602 = vadd.f32 %v365, %v601
    %v603 = vpop.f32.mrf.mxu0
    %604 = vmatprep.mubr.f32.mxu0 0.0
    %v605 = vand.u32 %v242, 4294901760
    %606 = vmatmul.mubr.f32.gmra.mxu0 %v605
    %v607 = vpop.f32.mrf.mxu0
    %v608 = vadd.f32 %v375, %v607
    %v609 = vpop.f32.mrf.mxu0
    %610 = vmatprep.mubr.f32.mxu0 0.0
    %v611 = vand.u32 %v245, 4294901760
    %612 = vmatmul.mubr.f32.gmra.mxu0 %v611
    %v613 = vpop.f32.mrf.mxu0
    %v614 = vadd.f32 %v385, %v613
    %v615 = vpop.f32.mrf.mxu0
    %616 = vmatprep.mubr.f32.mxu0 0.0
    %v617 = vand.u32 %v248, 4294901760
    %618 = vmatmul.mubr.f32.gmra.mxu0 %v617
    %v619 = vpop.f32.mrf.mxu0
    %v620 = vadd.f32 %v395, %v619
    %v621 = vpop.f32.mrf.mxu0
    %622 = vmatprep.mubr.f32.mxu0 0.0
    %v623 = vand.u32 %v251, 4294901760
    %624 = vmatmul.mubr.f32.gmra.mxu0 %v623
    %v625 = vpop.f32.mrf.mxu0
    %v626 = vadd.f32 %v405, %v625
    %v627 = vpop.f32.mrf.mxu0
    %628 = vmatprep.mubr.f32.mxu0 0.0
    %v629 = vand.u32 %v254, 4294901760
    %630 = vmatmul.mubr.f32.gmra.mxu0 %v629
    %v631 = vpop.f32.mrf.mxu0
    %v632 = vadd.f32 %v415, %v631
    %v633 = vpop.f32.mrf.mxu0
    %634 = vmatprep.mubr.f32.mxu0 0.0
    %v635 = vand.u32 %v257, 4294901760
    %636 = vmatmul.mubr.f32.gmra.mxu0 %v635
    %v637 = vpop.f32.mrf.mxu0
    %v638 = vadd.f32 %v425, %v637
    %v639 = vpop.f32.mrf.mxu0
    %640 = vmatprep.mubr.f32.mxu0 0.0
    %v641 = vand.u32 %v260, 4294901760
    %642 = vmatmul.mubr.f32.gmra.mxu0 %v641
    %v643 = vpop.f32.mrf.mxu0
    %v644 = vadd.f32 %v435, %v643
    %v645 = vpop.f32.mrf.mxu0
    %646 = vmatprep.mubr.f32.mxu0 0.0
    %v647 = vand.u32 %v263, 4294901760
    %648 = vmatmul.mubr.f32.gmra.mxu0 %v647
    %v649 = vpop.f32.mrf.mxu0
    %v650 = vadd.f32 %v445, %v649
    %v651 = vpop.f32.mrf.mxu0
    %652 = vmatprep.mubr.f32.mxu0 0.0
    %v653 = vand.u32 %v266, 4294901760
    %654 = vmatmul.mubr.f32.gmra.mxu0 %v653
    %v655 = vpop.f32.mrf.mxu0
    %v656 = vadd.f32 %v455, %v655
    %v657 = vpop.f32.mrf.mxu0
    %658 = vmatprep.mubr.f32.mxu0 0.0
    %v659 = vand.u32 %v269, 4294901760
    %660 = vmatmul.mubr.f32.gmra.mxu0 %v659
    %v661 = vpop.f32.mrf.mxu0
    %v662 = vadd.f32 %v465, %v661
    %v663 = vpop.f32.mrf.mxu0
    %664 = vdwg.mxu0
    %665 = vmatprep.subr.mxu0 0.0
    %666 = vmatpush1.msra.mxu0 0.0
    %667 = vmatprep.subr.mxu0 0.0
    %668 = vmatpush1.msra.mxu0 0.0
    %669 = vmatprep.subr.mxu0 0.0
    %670 = vmatpush1.msra.mxu0 0.0
    %671 = vmatprep.subr.mxu0 0.0
    %672 = vmatpush1.msra.mxu0 0.0
    %673 = vmatprep.subr.mxu0 0.0
    %v674 = vand.u32 %v221, 4294901760
    %v675 = vsub.f32 %v221, %v674
    %676 = vmatpush1.msra.mxu0 %v675
    %677 = vmatprep.subr.mxu0 0.0
    %v678 = vand.u32 %v220, 4294901760
    %v679 = vsub.f32 %v220, %v678
    %680 = vmatpush1.msra.mxu0 %v679
    %681 = vmatprep.subr.mxu0 0.0
    %v682 = vand.u32 %v219, 4294901760
    %v683 = vsub.f32 %v219, %v682
    %684 = vmatpush1.msra.mxu0 %v683
    %685 = vmatprep.subr.mxu0 0.0
    %v686 = vand.u32 %v218, 4294901760
    %v687 = vsub.f32 %v218, %v686
    %688 = vmatpush1.msra.mxu0 %v687
    %689 = vmatprep.subr.mxu0 0.0
    %v690 = vand.u32 %v217, 4294901760
    %v691 = vsub.f32 %v217, %v690
    %692 = vmatpush1.msra.mxu0 %v691
    %693 = vmatprep.subr.mxu0 0.0
    %v694 = vand.u32 %v216, 4294901760
    %v695 = vsub.f32 %v216, %v694
    %696 = vmatpush1.msra.mxu0 %v695
    %697 = vmatprep.subr.mxu0 0.0
    %v698 = vand.u32 %v215, 4294901760
    %v699 = vsub.f32 %v215, %v698
    %700 = vmatpush1.msra.mxu0 %v699
    %701 = vmatprep.subr.mxu0 0.0
    %v702 = vand.u32 %v214, 4294901760
    %v703 = vsub.f32 %v214, %v702
    %704 = vmatpush1.msra.mxu0 %v703
    %705 = vmatprep.subr.mxu0 0.0
    %v706 = vand.u32 %v213, 4294901760
    %v707 = vsub.f32 %v213, %v706
    %708 = vmatpush1.msra.mxu0 %v707
    %709 = vmatprep.subr.mxu0 0.0
    %v710 = vand.u32 %v212, 4294901760
    %v711 = vsub.f32 %v212, %v710
    %712 = vmatpush1.msra.mxu0 %v711
    %713 = vmatprep.subr.mxu0 0.0
    %v714 = vand.u32 %v211, 4294901760
    %v715 = vsub.f32 %v211, %v714
    %716 = vmatpush1.msra.mxu0 %v715
    %717 = vmatprep.subr.mxu0 0.0
    %v718 = vand.u32 %v210, 4294901760
    %v719 = vsub.f32 %v210, %v718
    %720 = vmatpush1.msra.mxu0 %v719
    %721 = vmatprep.subr.mxu0 0.0
    %722 = vmatpush2.msra.mxu0 0.0
    %723 = vmatprep.subr.mxu0 0.0
    %724 = vmatpush2.msra.mxu0 0.0
    %725 = vmatprep.subr.mxu0 0.0
    %726 = vmatpush2.msra.mxu0 0.0
    %727 = vmatprep.subr.mxu0 0.0
    %728 = vmatpush2.msra.mxu0 0.0
    %729 = vmatprep.subr.mxu0 0.0
    %730 = vmatpush2.msra.mxu0 0.0
    %731 = vmatprep.subr.mxu0 0.0
    %732 = vmatpush2.msra.mxu0 0.0
    %733 = vmatprep.subr.mxu0 0.0
    %734 = vmatpush2.msra.mxu0 0.0
    %735 = vmatprep.subr.mxu0 0.0
    %736 = vmatpush2.msra.mxu0 0.0
    %737 = vmatprep.subr.mxu0 0.0
    %738 = vmatpush2.msra.mxu0 0.0
    %739 = vmatprep.subr.mxu0 0.0
    %740 = vmatpush2.msra.mxu0 0.0
    %741 = vmatprep.subr.mxu0 0.0
    %742 = vmatpush2.msra.mxu0 0.0
    %743 = vmatprep.subr.mxu0 0.0
    %744 = vmatpush2.msra.mxu0 0.0
    %745 = vmatprep.subr.mxu0 0.0
    %746 = vmatpush2.msra.mxu0 0.0
    %747 = vmatprep.subr.mxu0 0.0
    %748 = vmatpush2.msra.mxu0 0.0
    %749 = vmatprep.subr.mxu0 0.0
    %750 = vmatpush2.msra.mxu0 0.0
    %751 = vmatprep.subr.mxu0 0.0
    %752 = vmatpush2.msra.mxu0 0.0
    %753 = vmatprep.mubr.f32.mxu0 0.0
    %v754 = vand.u32 %v236, 4294901760
    %v755 = vsub.f32 %v236, %v754
    %756 = vmatmul.mubr.f32.gmra.mxu0 %v755
    %v757 = vpop.f32.mrf.mxu0
    %v758 = vadd.f32 %v596, %v757
    %v759 = vpop.f32.mrf.mxu0
    %760 = vmatprep.mubr.f32.mxu0 0.0
    %v761 = vand.u32 %v239, 4294901760
    %v762 = vsub.f32 %v239, %v761
    %763 = vmatmul.mubr.f32.gmra.mxu0 %v762
    %v764 = vpop.f32.mrf.mxu0
    %v765 = vadd.f32 %v602, %v764
    %v766 = vpop.f32.mrf.mxu0
    %767 = vmatprep.mubr.f32.mxu0 0.0
    %v768 = vand.u32 %v242, 4294901760
    %v769 = vsub.f32 %v242, %v768
    %770 = vmatmul.mubr.f32.gmra.mxu0 %v769
    %v771 = vpop.f32.mrf.mxu0
    %v772 = vadd.f32 %v608, %v771
    %v773 = vpop.f32.mrf.mxu0
    %774 = vmatprep.mubr.f32.mxu0 0.0
    %v775 = vand.u32 %v245, 4294901760
    %v776 = vsub.f32 %v245, %v775
    %777 = vmatmul.mubr.f32.gmra.mxu0 %v776
    %v778 = vpop.f32.mrf.mxu0
    %v779 = vadd.f32 %v614, %v778
    %v780 = vpop.f32.mrf.mxu0
    %781 = vmatprep.mubr.f32.mxu0 0.0
    %v782 = vand.u32 %v248, 4294901760
    %v783 = vsub.f32 %v248, %v782
    %784 = vmatmul.mubr.f32.gmra.mxu0 %v783
    %v785 = vpop.f32.mrf.mxu0
    %v786 = vadd.f32 %v620, %v785
    %v787 = vpop.f32.mrf.mxu0
    %788 = vmatprep.mubr.f32.mxu0 0.0
    %v789 = vand.u32 %v251, 4294901760
    %v790 = vsub.f32 %v251, %v789
    %791 = vmatmul.mubr.f32.gmra.mxu0 %v790
    %v792 = vpop.f32.mrf.mxu0
    %v793 = vadd.f32 %v626, %v792
    %v794 = vpop.f32.mrf.mxu0
    %795 = vmatprep.mubr.f32.mxu0 0.0
    %v796 = vand.u32 %v254, 4294901760
    %v797 = vsub.f32 %v254, %v796
    %798 = vmatmul.mubr.f32.gmra.mxu0 %v797
    %v799 = vpop.f32.mrf.mxu0
    %v800 = vadd.f32 %v632, %v799
    %v801 = vpop.f32.mrf.mxu0
    %802 = vmatprep.mubr.f32.mxu0 0.0
    %v803 = vand.u32 %v257, 4294901760
    %v804 = vsub.f32 %v257, %v803
    %805 = vmatmul.mubr.f32.gmra.mxu0 %v804
    %v806 = vpop.f32.mrf.mxu0
    %v807 = vadd.f32 %v638, %v806
    %v808 = vpop.f32.mrf.mxu0
    %809 = vmatprep.mubr.f32.mxu0 0.0
    %v810 = vand.u32 %v260, 4294901760
    %v811 = vsub.f32 %v260, %v810
    %812 = vmatmul.mubr.f32.gmra.mxu0 %v811
    %v813 = vpop.f32.mrf.mxu0
    %v814 = vadd.f32 %v644, %v813
    %v815 = vpop.f32.mrf.mxu0
    %816 = vmatprep.mubr.f32.mxu0 0.0
    %v817 = vand.u32 %v263, 4294901760
    %v818 = vsub.f32 %v263, %v817
    %819 = vmatmul.mubr.f32.gmra.mxu0 %v818
    %v820 = vpop.f32.mrf.mxu0
    %v821 = vadd.f32 %v650, %v820
    %v822 = vpop.f32.mrf.mxu0
    %823 = vmatprep.mubr.f32.mxu0 0.0
    %v824 = vand.u32 %v266, 4294901760
    %v825 = vsub.f32 %v266, %v824
    %826 = vmatmul.mubr.f32.gmra.mxu0 %v825
    %v827 = vpop.f32.mrf.mxu0
    %v828 = vadd.f32 %v656, %v827
    %v829 = vpop.f32.mrf.mxu0
    %830 = vmatprep.mubr.f32.mxu0 0.0
    %v831 = vand.u32 %v269, 4294901760
    %v832 = vsub.f32 %v269, %v831
    %833 = vmatmul.mubr.f32.gmra.mxu0 %v832
    %v834 = vpop.f32.mrf.mxu0
    %v835 = vadd.f32 %v662, %v834
    %v836 = vpop.f32.mrf.mxu0
    %837 = vdwg.mxu0
    %838 = vmatprep.subr.mxu0 0.0
    %839 = vmatpush1.msra.mxu0 0.0
    %840 = vmatprep.subr.mxu0 0.0
    %841 = vmatpush1.msra.mxu0 0.0
    %842 = vmatprep.subr.mxu0 0.0
    %843 = vmatpush1.msra.mxu0 0.0
    %844 = vmatprep.subr.mxu0 0.0
    %845 = vmatpush1.msra.mxu0 0.0
    %846 = vmatprep.subr.mxu0 0.0
    %v847 = vand.u32 %v221, 4294901760
    %848 = vmatpush1.msra.mxu0 %v847
    %849 = vmatprep.subr.mxu0 0.0
    %v850 = vand.u32 %v220, 4294901760
    %851 = vmatpush1.msra.mxu0 %v850
    %852 = vmatprep.subr.mxu0 0.0
    %v853 = vand.u32 %v219, 4294901760
    %854 = vmatpush1.msra.mxu0 %v853
    %855 = vmatprep.subr.mxu0 0.0
    %v856 = vand.u32 %v218, 4294901760
    %857 = vmatpush1.msra.mxu0 %v856
    %858 = vmatprep.subr.mxu0 0.0
    %v859 = vand.u32 %v217, 4294901760
    %860 = vmatpush1.msra.mxu0 %v859
    %861 = vmatprep.subr.mxu0 0.0
    %v862 = vand.u32 %v216, 4294901760
    %863 = vmatpush1.msra.mxu0 %v862
    %864 = vmatprep.subr.mxu0 0.0
    %v865 = vand.u32 %v215, 4294901760
    %866 = vmatpush1.msra.mxu0 %v865
    %867 = vmatprep.subr.mxu0 0.0
    %v868 = vand.u32 %v214, 4294901760
    %869 = vmatpush1.msra.mxu0 %v868
    %870 = vmatprep.subr.mxu0 0.0
    %v871 = vand.u32 %v213, 4294901760
    %872 = vmatpush1.msra.mxu0 %v871
    %873 = vmatprep.subr.mxu0 0.0
    %v874 = vand.u32 %v212, 4294901760
    %875 = vmatpush1.msra.mxu0 %v874
    %876 = vmatprep.subr.mxu0 0.0
    %v877 = vand.u32 %v211, 4294901760
    %878 = vmatpush1.msra.mxu0 %v877
    %879 = vmatprep.subr.mxu0 0.0
    %v880 = vand.u32 %v210, 4294901760
    %881 = vmatpush1.msra.mxu0 %v880
    %882 = vmatprep.subr.mxu0 0.0
    %883 = vmatpush2.msra.mxu0 0.0
    %884 = vmatprep.subr.mxu0 0.0
    %885 = vmatpush2.msra.mxu0 0.0
    %886 = vmatprep.subr.mxu0 0.0
    %887 = vmatpush2.msra.mxu0 0.0
    %888 = vmatprep.subr.mxu0 0.0
    %889 = vmatpush2.msra.mxu0 0.0
    %890 = vmatprep.subr.mxu0 0.0
    %891 = vmatpush2.msra.mxu0 0.0
    %892 = vmatprep.subr.mxu0 0.0
    %893 = vmatpush2.msra.mxu0 0.0
    %894 = vmatprep.subr.mxu0 0.0
    %895 = vmatpush2.msra.mxu0 0.0
    %896 = vmatprep.subr.mxu0 0.0
    %897 = vmatpush2.msra.mxu0 0.0
    %898 = vmatprep.subr.mxu0 0.0
    %899 = vmatpush2.msra.mxu0 0.0
    %900 = vmatprep.subr.mxu0 0.0
    %901 = vmatpush2.msra.mxu0 0.0
    %902 = vmatprep.subr.mxu0 0.0
    %903 = vmatpush2.msra.mxu0 0.0
    %904 = vmatprep.subr.mxu0 0.0
    %905 = vmatpush2.msra.mxu0 0.0
    %906 = vmatprep.subr.mxu0 0.0
    %907 = vmatpush2.msra.mxu0 0.0
    %908 = vmatprep.subr.mxu0 0.0
    %909 = vmatpush2.msra.mxu0 0.0
    %910 = vmatprep.subr.mxu0 0.0
    %911 = vmatpush2.msra.mxu0 0.0
    %912 = vmatprep.subr.mxu0 0.0
    %913 = vmatpush2.msra.mxu0 0.0
    %914 = vmatprep.mubr.f32.mxu0 0.0
    %v915 = vand.u32 %v236, 4294901760
    %v916 = vsub.f32 %v236, %v915
    %v917 = vand.u32 %v916, 4294901760
    %918 = vmatmul.mubr.f32.gmra.mxu0 %v917
    %v919 = vpop.f32.mrf.mxu0
    %v920 = vadd.f32 %v758, %v919
    %v921 = vpop.f32.mrf.mxu0
    %922 = vmatprep.mubr.f32.mxu0 0.0
    %v923 = vand.u32 %v239, 4294901760
    %v924 = vsub.f32 %v239, %v923
    %v925 = vand.u32 %v924, 4294901760
    %926 = vmatmul.mubr.f32.gmra.mxu0 %v925
    %v927 = vpop.f32.mrf.mxu0
    %v928 = vadd.f32 %v765, %v927
    %v929 = vpop.f32.mrf.mxu0
    %930 = vmatprep.mubr.f32.mxu0 0.0
    %v931 = vand.u32 %v242, 4294901760
    %v932 = vsub.f32 %v242, %v931
    %v933 = vand.u32 %v932, 4294901760
    %934 = vmatmul.mubr.f32.gmra.mxu0 %v933
    %v935 = vpop.f32.mrf.mxu0
    %v936 = vadd.f32 %v772, %v935
    %v937 = vpop.f32.mrf.mxu0
    %938 = vmatprep.mubr.f32.mxu0 0.0
    %v939 = vand.u32 %v245, 4294901760
    %v940 = vsub.f32 %v245, %v939
    %v941 = vand.u32 %v940, 4294901760
    %942 = vmatmul.mubr.f32.gmra.mxu0 %v941
    %v943 = vpop.f32.mrf.mxu0
    %v944 = vadd.f32 %v779, %v943
    %v945 = vpop.f32.mrf.mxu0
    %946 = vmatprep.mubr.f32.mxu0 0.0
    %v947 = vand.u32 %v248, 4294901760
    %v948 = vsub.f32 %v248, %v947
    %v949 = vand.u32 %v948, 4294901760
    %950 = vmatmul.mubr.f32.gmra.mxu0 %v949
    %v951 = vpop.f32.mrf.mxu0
    %v952 = vadd.f32 %v786, %v951
    %v953 = vpop.f32.mrf.mxu0
    %954 = vmatprep.mubr.f32.mxu0 0.0
    %v955 = vand.u32 %v251, 4294901760
    %v956 = vsub.f32 %v251, %v955
    %v957 = vand.u32 %v956, 4294901760
    %958 = vmatmul.mubr.f32.gmra.mxu0 %v957
    %v959 = vpop.f32.mrf.mxu0
    %v960 = vadd.f32 %v793, %v959
    %v961 = vpop.f32.mrf.mxu0
    %962 = vmatprep.mubr.f32.mxu0 0.0
    %v963 = vand.u32 %v254, 4294901760
    %v964 = vsub.f32 %v254, %v963
    %v965 = vand.u32 %v964, 4294901760
    %966 = vmatmul.mubr.f32.gmra.mxu0 %v965
    %v967 = vpop.f32.mrf.mxu0
    %v968 = vadd.f32 %v800, %v967
    %v969 = vpop.f32.mrf.mxu0
    %970 = vmatprep.mubr.f32.mxu0 0.0
    %v971 = vand.u32 %v257, 4294901760
    %v972 = vsub.f32 %v257, %v971
    %v973 = vand.u32 %v972, 4294901760
    %974 = vmatmul.mubr.f32.gmra.mxu0 %v973
    %v975 = vpop.f32.mrf.mxu0
    %v976 = vadd.f32 %v807, %v975
    %v977 = vpop.f32.mrf.mxu0
    %978 = vmatprep.mubr.f32.mxu0 0.0
    %v979 = vand.u32 %v260, 4294901760
    %v980 = vsub.f32 %v260, %v979
    %v981 = vand.u32 %v980, 4294901760
    %982 = vmatmul.mubr.f32.gmra.mxu0 %v981
    %v983 = vpop.f32.mrf.mxu0
    %v984 = vadd.f32 %v814, %v983
    %v985 = vpop.f32.mrf.mxu0
    %986 = vmatprep.mubr.f32.mxu0 0.0
    %v987 = vand.u32 %v263, 4294901760
    %v988 = vsub.f32 %v263, %v987
    %v989 = vand.u32 %v988, 4294901760
    %990 = vmatmul.mubr.f32.gmra.mxu0 %v989
    %v991 = vpop.f32.mrf.mxu0
    %v992 = vadd.f32 %v821, %v991
    %v993 = vpop.f32.mrf.mxu0
    %994 = vmatprep.mubr.f32.mxu0 0.0
    %v995 = vand.u32 %v266, 4294901760
    %v996 = vsub.f32 %v266, %v995
    %v997 = vand.u32 %v996, 4294901760
    %998 = vmatmul.mubr.f32.gmra.mxu0 %v997
    %v999 = vpop.f32.mrf.mxu0
    %v1000 = vadd.f32 %v828, %v999
    %v1001 = vpop.f32.mrf.mxu0
    %1002 = vmatprep.mubr.f32.mxu0 0.0
    %v1003 = vand.u32 %v269, 4294901760
    %v1004 = vsub.f32 %v269, %v1003
    %v1005 = vand.u32 %v1004, 4294901760
    %1006 = vmatmul.mubr.f32.gmra.mxu0 %v1005
    %v1007 = vpop.f32.mrf.mxu0
    %v1008 = vadd.f32 %v835, %v1007
    %v1009 = vpop.f32.mrf.mxu0
    %1010 = vdwg.mxu0
    %1011 = vmatprep.subr.mxu0 0.0
    %1012 = vmatpush1.msra.mxu0 0.0
    %1013 = vmatprep.subr.mxu0 0.0
    %1014 = vmatpush1.msra.mxu0 0.0
    %1015 = vmatprep.subr.mxu0 0.0
    %1016 = vmatpush1.msra.mxu0 0.0
    %1017 = vmatprep.subr.mxu0 0.0
    %1018 = vmatpush1.msra.mxu0 0.0
    %1019 = vmatprep.subr.mxu0 0.0
    %v1020 = vand.u32 %v221, 4294901760
    %v1021 = vsub.f32 %v221, %v1020
    %v1022 = vand.u32 %v1021, 4294901760
    %1023 = vmatpush1.msra.mxu0 %v1022
    %1024 = vmatprep.subr.mxu0 0.0
    %v1025 = vand.u32 %v220, 4294901760
    %v1026 = vsub.f32 %v220, %v1025
    %v1027 = vand.u32 %v1026, 4294901760
    %1028 = vmatpush1.msra.mxu0 %v1027
    %1029 = vmatprep.subr.mxu0 0.0
    %v1030 = vand.u32 %v219, 4294901760
    %v1031 = vsub.f32 %v219, %v1030
    %v1032 = vand.u32 %v1031, 4294901760
    %1033 = vmatpush1.msra.mxu0 %v1032
    %1034 = vmatprep.subr.mxu0 0.0
    %v1035 = vand.u32 %v218, 4294901760
    %v1036 = vsub.f32 %v218, %v1035
    %v1037 = vand.u32 %v1036, 4294901760
    %1038 = vmatpush1.msra.mxu0 %v1037
    %1039 = vmatprep.subr.mxu0 0.0
    %v1040 = vand.u32 %v217, 4294901760
    %v1041 = vsub.f32 %v217, %v1040
    %v1042 = vand.u32 %v1041, 4294901760
    %1043 = vmatpush1.msra.mxu0 %v1042
    %1044 = vmatprep.subr.mxu0 0.0
    %v1045 = vand.u32 %v216, 4294901760
    %v1046 = vsub.f32 %v216, %v1045
    %v1047 = vand.u32 %v1046, 4294901760
    %1048 = vmatpush1.msra.mxu0 %v1047
    %1049 = vmatprep.subr.mxu0 0.0
    %v1050 = vand.u32 %v215, 4294901760
    %v1051 = vsub.f32 %v215, %v1050
    %v1052 = vand.u32 %v1051, 4294901760
    %1053 = vmatpush1.msra.mxu0 %v1052
    %1054 = vmatprep.subr.mxu0 0.0
    %v1055 = vand.u32 %v214, 4294901760
    %v1056 = vsub.f32 %v214, %v1055
    %v1057 = vand.u32 %v1056, 4294901760
    %1058 = vmatpush1.msra.mxu0 %v1057
    %1059 = vmatprep.subr.mxu0 0.0
    %v1060 = vand.u32 %v213, 4294901760
    %v1061 = vsub.f32 %v213, %v1060
    %v1062 = vand.u32 %v1061, 4294901760
    %1063 = vmatpush1.msra.mxu0 %v1062
    %1064 = vmatprep.subr.mxu0 0.0
    %v1065 = vand.u32 %v212, 4294901760
    %v1066 = vsub.f32 %v212, %v1065
    %v1067 = vand.u32 %v1066, 4294901760
    %1068 = vmatpush1.msra.mxu0 %v1067
    %1069 = vmatprep.subr.mxu0 0.0
    %v1070 = vand.u32 %v211, 4294901760
    %v1071 = vsub.f32 %v211, %v1070
    %v1072 = vand.u32 %v1071, 4294901760
    %1073 = vmatpush1.msra.mxu0 %v1072
    %1074 = vmatprep.subr.mxu0 0.0
    %v1075 = vand.u32 %v210, 4294901760
    %v1076 = vsub.f32 %v210, %v1075
    %v1077 = vand.u32 %v1076, 4294901760
    %1078 = vmatpush1.msra.mxu0 %v1077
    %1079 = vmatprep.subr.mxu0 0.0
    %1080 = vmatpush2.msra.mxu0 0.0
    %1081 = vmatprep.subr.mxu0 0.0
    %1082 = vmatpush2.msra.mxu0 0.0
    %1083 = vmatprep.subr.mxu0 0.0
    %1084 = vmatpush2.msra.mxu0 0.0
    %1085 = vmatprep.subr.mxu0 0.0
    %1086 = vmatpush2.msra.mxu0 0.0
    %1087 = vmatprep.subr.mxu0 0.0
    %1088 = vmatpush2.msra.mxu0 0.0
    %1089 = vmatprep.subr.mxu0 0.0
    %1090 = vmatpush2.msra.mxu0 0.0
    %1091 = vmatprep.subr.mxu0 0.0
    %1092 = vmatpush2.msra.mxu0 0.0
    %1093 = vmatprep.subr.mxu0 0.0
    %1094 = vmatpush2.msra.mxu0 0.0
    %1095 = vmatprep.subr.mxu0 0.0
    %1096 = vmatpush2.msra.mxu0 0.0
    %1097 = vmatprep.subr.mxu0 0.0
    %1098 = vmatpush2.msra.mxu0 0.0
    %1099 = vmatprep.subr.mxu0 0.0
    %1100 = vmatpush2.msra.mxu0 0.0
    %1101 = vmatprep.subr.mxu0 0.0
    %1102 = vmatpush2.msra.mxu0 0.0
    %1103 = vmatprep.subr.mxu0 0.0
    %1104 = vmatpush2.msra.mxu0 0.0
    %1105 = vmatprep.subr.mxu0 0.0
    %1106 = vmatpush2.msra.mxu0 0.0
    %1107 = vmatprep.subr.mxu0 0.0
    %1108 = vmatpush2.msra.mxu0 0.0
    %1109 = vmatprep.subr.mxu0 0.0
    %1110 = vmatpush2.msra.mxu0 0.0
    %1111 = vmatprep.mubr.f32.mxu0 0.0
    %v1112 = vand.u32 %v236, 4294901760
    %1113 = vmatmul.mubr.f32.gmra.mxu0 %v1112
    %v1114 = vpop.f32.mrf.mxu0
    %v1115 = vadd.f32 %v920, %v1114
    %v1116 = vpop.f32.mrf.mxu0
    %1117 = vmatprep.mubr.f32.mxu0 0.0
    %v1118 = vand.u32 %v239, 4294901760
    %1119 = vmatmul.mubr.f32.gmra.mxu0 %v1118
    %v1120 = vpop.f32.mrf.mxu0
    %v1121 = vadd.f32 %v928, %v1120
    %v1122 = vpop.f32.mrf.mxu0
    %1123 = vmatprep.mubr.f32.mxu0 0.0
    %v1124 = vand.u32 %v242, 4294901760
    %1125 = vmatmul.mubr.f32.gmra.mxu0 %v1124
    %v1126 = vpop.f32.mrf.mxu0
    %v1127 = vadd.f32 %v936, %v1126
    %v1128 = vpop.f32.mrf.mxu0
    %1129 = vmatprep.mubr.f32.mxu0 0.0
    %v1130 = vand.u32 %v245, 4294901760
    %1131 = vmatmul.mubr.f32.gmra.mxu0 %v1130
    %v1132 = vpop.f32.mrf.mxu0
    %v1133 = vadd.f32 %v944, %v1132
    %v1134 = vpop.f32.mrf.mxu0
    %1135 = vmatprep.mubr.f32.mxu0 0.0
    %v1136 = vand.u32 %v248, 4294901760
    %1137 = vmatmul.mubr.f32.gmra.mxu0 %v1136
    %v1138 = vpop.f32.mrf.mxu0
    %v1139 = vadd.f32 %v952, %v1138
    %v1140 = vpop.f32.mrf.mxu0
    %1141 = vmatprep.mubr.f32.mxu0 0.0
    %v1142 = vand.u32 %v251, 4294901760
    %1143 = vmatmul.mubr.f32.gmra.mxu0 %v1142
    %v1144 = vpop.f32.mrf.mxu0
    %v1145 = vadd.f32 %v960, %v1144
    %v1146 = vpop.f32.mrf.mxu0
    %1147 = vmatprep.mubr.f32.mxu0 0.0
    %v1148 = vand.u32 %v254, 4294901760
    %1149 = vmatmul.mubr.f32.gmra.mxu0 %v1148
    %v1150 = vpop.f32.mrf.mxu0
    %v1151 = vadd.f32 %v968, %v1150
    %v1152 = vpop.f32.mrf.mxu0
    %1153 = vmatprep.mubr.f32.mxu0 0.0
    %v1154 = vand.u32 %v257, 4294901760
    %1155 = vmatmul.mubr.f32.gmra.mxu0 %v1154
    %v1156 = vpop.f32.mrf.mxu0
    %v1157 = vadd.f32 %v976, %v1156
    %v1158 = vpop.f32.mrf.mxu0
    %1159 = vmatprep.mubr.f32.mxu0 0.0
    %v1160 = vand.u32 %v260, 4294901760
    %1161 = vmatmul.mubr.f32.gmra.mxu0 %v1160
    %v1162 = vpop.f32.mrf.mxu0
    %v1163 = vadd.f32 %v984, %v1162
    %v1164 = vpop.f32.mrf.mxu0
    %1165 = vmatprep.mubr.f32.mxu0 0.0
    %v1166 = vand.u32 %v263, 4294901760
    %1167 = vmatmul.mubr.f32.gmra.mxu0 %v1166
    %v1168 = vpop.f32.mrf.mxu0
    %v1169 = vadd.f32 %v992, %v1168
    %v1170 = vpop.f32.mrf.mxu0
    %1171 = vmatprep.mubr.f32.mxu0 0.0
    %v1172 = vand.u32 %v266, 4294901760
    %1173 = vmatmul.mubr.f32.gmra.mxu0 %v1172
    %v1174 = vpop.f32.mrf.mxu0
    %v1175 = vadd.f32 %v1000, %v1174
    %v1176 = vpop.f32.mrf.mxu0
    %1177 = vmatprep.mubr.f32.mxu0 0.0
    %v1178 = vand.u32 %v269, 4294901760
    %1179 = vmatmul.mubr.f32.gmra.mxu0 %v1178
    %v1180 = vpop.f32.mrf.mxu0
    %v1181 = vadd.f32 %v1008, %v1180
    %v1182 = vpop.f32.mrf.mxu0
    %1183 = vdwg.mxu0
    %1184 = vmatprep.subr.mxu0 0.0
    %1185 = vmatpush1.msra.mxu0 0.0
    %1186 = vmatprep.subr.mxu0 0.0
    %1187 = vmatpush1.msra.mxu0 0.0
    %1188 = vmatprep.subr.mxu0 0.0
    %1189 = vmatpush1.msra.mxu0 0.0
    %1190 = vmatprep.subr.mxu0 0.0
    %1191 = vmatpush1.msra.mxu0 0.0
    %1192 = vmatprep.subr.mxu0 0.0
    %v1193 = vand.u32 %v221, 4294901760
    %1194 = vmatpush1.msra.mxu0 %v1193
    %1195 = vmatprep.subr.mxu0 0.0
    %v1196 = vand.u32 %v220, 4294901760
    %1197 = vmatpush1.msra.mxu0 %v1196
    %1198 = vmatprep.subr.mxu0 0.0
    %v1199 = vand.u32 %v219, 4294901760
    %1200 = vmatpush1.msra.mxu0 %v1199
    %1201 = vmatprep.subr.mxu0 0.0
    %v1202 = vand.u32 %v218, 4294901760
    %1203 = vmatpush1.msra.mxu0 %v1202
    %1204 = vmatprep.subr.mxu0 0.0
    %v1205 = vand.u32 %v217, 4294901760
    %1206 = vmatpush1.msra.mxu0 %v1205
    %1207 = vmatprep.subr.mxu0 0.0
    %v1208 = vand.u32 %v216, 4294901760
    %1209 = vmatpush1.msra.mxu0 %v1208
    %1210 = vmatprep.subr.mxu0 0.0
    %v1211 = vand.u32 %v215, 4294901760
    %1212 = vmatpush1.msra.mxu0 %v1211
    %1213 = vmatprep.subr.mxu0 0.0
    %v1214 = vand.u32 %v214, 4294901760
    %1215 = vmatpush1.msra.mxu0 %v1214
    %1216 = vmatprep.subr.mxu0 0.0
    %v1217 = vand.u32 %v213, 4294901760
    %1218 = vmatpush1.msra.mxu0 %v1217
    %1219 = vmatprep.subr.mxu0 0.0
    %v1220 = vand.u32 %v212, 4294901760
    %1221 = vmatpush1.msra.mxu0 %v1220
    %1222 = vmatprep.subr.mxu0 0.0
    %v1223 = vand.u32 %v211, 4294901760
    %1224 = vmatpush1.msra.mxu0 %v1223
    %1225 = vmatprep.subr.mxu0 0.0
    %v1226 = vand.u32 %v210, 4294901760
    %1227 = vmatpush1.msra.mxu0 %v1226
    %1228 = vmatprep.subr.mxu0 0.0
    %1229 = vmatpush2.msra.mxu0 0.0
    %1230 = vmatprep.subr.mxu0 0.0
    %1231 = vmatpush2.msra.mxu0 0.0
    %1232 = vmatprep.subr.mxu0 0.0
    %1233 = vmatpush2.msra.mxu0 0.0
    %1234 = vmatprep.subr.mxu0 0.0
    %1235 = vmatpush2.msra.mxu0 0.0
    %1236 = vmatprep.subr.mxu0 0.0
    %1237 = vmatpush2.msra.mxu0 0.0
    %1238 = vmatprep.subr.mxu0 0.0
    %1239 = vmatpush2.msra.mxu0 0.0
    %1240 = vmatprep.subr.mxu0 0.0
    %1241 = vmatpush2.msra.mxu0 0.0
    %1242 = vmatprep.subr.mxu0 0.0
    %1243 = vmatpush2.msra.mxu0 0.0
    %1244 = vmatprep.subr.mxu0 0.0
    %1245 = vmatpush2.msra.mxu0 0.0
    %1246 = vmatprep.subr.mxu0 0.0
    %1247 = vmatpush2.msra.mxu0 0.0
    %1248 = vmatprep.subr.mxu0 0.0
    %1249 = vmatpush2.msra.mxu0 0.0
    %1250 = vmatprep.subr.mxu0 0.0
    %1251 = vmatpush2.msra.mxu0 0.0
    %1252 = vmatprep.subr.mxu0 0.0
    %1253 = vmatpush2.msra.mxu0 0.0
    %1254 = vmatprep.subr.mxu0 0.0
    %1255 = vmatpush2.msra.mxu0 0.0
    %1256 = vmatprep.subr.mxu0 0.0
    %1257 = vmatpush2.msra.mxu0 0.0
    %1258 = vmatprep.subr.mxu0 0.0
    %1259 = vmatpush2.msra.mxu0 0.0
    %1260 = vmatprep.mubr.f32.mxu0 0.0
    %v1261 = vand.u32 %v236, 4294901760
    %1262 = vmatmul.mubr.f32.gmra.mxu0 %v1261
    %v1263 = vpop.f32.mrf.mxu0
    %v1264 = vadd.f32 %v1115, %v1263
    %v1265 = vpop.f32.mrf.mxu0
    %1266 = vmatprep.mubr.f32.mxu0 0.0
    %v1267 = vand.u32 %v239, 4294901760
    %1268 = vmatmul.mubr.f32.gmra.mxu0 %v1267
    %v1269 = vpop.f32.mrf.mxu0
    %v1270 = vadd.f32 %v1121, %v1269
    %v1271 = vpop.f32.mrf.mxu0
    %1272 = vmatprep.mubr.f32.mxu0 0.0
    %v1273 = vand.u32 %v242, 4294901760
    %1274 = vmatmul.mubr.f32.gmra.mxu0 %v1273
    %v1275 = vpop.f32.mrf.mxu0
    %v1276 = vadd.f32 %v1127, %v1275
    %v1277 = vpop.f32.mrf.mxu0
    %1278 = vmatprep.mubr.f32.mxu0 0.0
    %v1279 = vand.u32 %v245, 4294901760
    %1280 = vmatmul.mubr.f32.gmra.mxu0 %v1279
    %v1281 = vpop.f32.mrf.mxu0
    %v1282 = vadd.f32 %v1133, %v1281
    %v1283 = vpop.f32.mrf.mxu0
    %1284 = vmatprep.mubr.f32.mxu0 0.0
    %v1285 = vand.u32 %v248, 4294901760
    %1286 = vmatmul.mubr.f32.gmra.mxu0 %v1285
    %v1287 = vpop.f32.mrf.mxu0
    %v1288 = vadd.f32 %v1139, %v1287
    %v1289 = vpop.f32.mrf.mxu0
    %1290 = vmatprep.mubr.f32.mxu0 0.0
    %v1291 = vand.u32 %v251, 4294901760
    %1292 = vmatmul.mubr.f32.gmra.mxu0 %v1291
    %v1293 = vpop.f32.mrf.mxu0
    %v1294 = vadd.f32 %v1145, %v1293
    %v1295 = vpop.f32.mrf.mxu0
    %1296 = vmatprep.mubr.f32.mxu0 0.0
    %v1297 = vand.u32 %v254, 4294901760
    %1298 = vmatmul.mubr.f32.gmra.mxu0 %v1297
    %v1299 = vpop.f32.mrf.mxu0
    %v1300 = vadd.f32 %v1151, %v1299
    %v1301 = vpop.f32.mrf.mxu0
    %1302 = vmatprep.mubr.f32.mxu0 0.0
    %v1303 = vand.u32 %v257, 4294901760
    %1304 = vmatmul.mubr.f32.gmra.mxu0 %v1303
    %v1305 = vpop.f32.mrf.mxu0
    %v1306 = vadd.f32 %v1157, %v1305
    %v1307 = vpop.f32.mrf.mxu0
    %1308 = vmatprep.mubr.f32.mxu0 0.0
    %v1309 = vand.u32 %v260, 4294901760
    %1310 = vmatmul.mubr.f32.gmra.mxu0 %v1309
    %v1311 = vpop.f32.mrf.mxu0
    %v1312 = vadd.f32 %v1163, %v1311
    %v1313 = vpop.f32.mrf.mxu0
    %1314 = vmatprep.mubr.f32.mxu0 0.0
    %v1315 = vand.u32 %v263, 4294901760
    %1316 = vmatmul.mubr.f32.gmra.mxu0 %v1315
    %v1317 = vpop.f32.mrf.mxu0
    %v1318 = vadd.f32 %v1169, %v1317
    %v1319 = vpop.f32.mrf.mxu0
    %1320 = vmatprep.mubr.f32.mxu0 0.0
    %v1321 = vand.u32 %v266, 4294901760
    %1322 = vmatmul.mubr.f32.gmra.mxu0 %v1321
    %v1323 = vpop.f32.mrf.mxu0
    %v1324 = vadd.f32 %v1175, %v1323
    %v1325 = vpop.f32.mrf.mxu0
    %1326 = vmatprep.mubr.f32.mxu0 0.0
    %v1327 = vand.u32 %v269, 4294901760
    %1328 = vmatmul.mubr.f32.gmra.mxu0 %v1327
    %v1329 = vpop.f32.mrf.mxu0
    %v1330 = vadd.f32 %v1181, %v1329
    %v1331 = vpop.f32.mrf.mxu0
    %1332 = vdwg.mxu0
    %1334 = vset.pattern.permute.xlu0 0
    %1335 = vperm.xlu0 %1334, %v174
    %v1336 = vpop.permute.xlu0 %1335
    %1339 = vset.pattern.permute.xlu0 0
    %1340 = vperm.xlu0 %1339, %v175
    %v1341 = vpop.permute.xlu0 %1340
    %1344 = vset.pattern.permute.xlu0 0
    %1345 = vperm.xlu0 %1344, %v176
    %v1346 = vpop.permute.xlu0 %1345
    %1349 = vset.pattern.permute.xlu0 0
    %1350 = vperm.xlu0 %1349, %v177
    %v1351 = vpop.permute.xlu0 %1350
    %1354 = vset.pattern.permute.xlu0 0
    %1355 = vperm.xlu0 %1354, %v178
    %v1356 = vpop.permute.xlu0 %1355
    %1359 = vset.pattern.permute.xlu0 0
    %1360 = vperm.xlu0 %1359, %v179
    %v1361 = vpop.permute.xlu0 %1360
    %1364 = vset.pattern.permute.xlu0 0
    %1365 = vperm.xlu0 %1364, %v180
    %v1366 = vpop.permute.xlu0 %1365
    %1369 = vset.pattern.permute.xlu0 0
    %1370 = vperm.xlu0 %1369, %v181
    %v1371 = vpop.permute.xlu0 %1370
    %1374 = vset.pattern.permute.xlu0 0
    %1375 = vperm.xlu0 %1374, %v182
    %v1376 = vpop.permute.xlu0 %1375
    %1379 = vset.pattern.permute.xlu0 0
    %1380 = vperm.xlu0 %1379, %v183
    %v1381 = vpop.permute.xlu0 %1380
    %1384 = vset.pattern.permute.xlu0 0
    %1385 = vperm.xlu0 %1384, %v184
    %v1386 = vpop.permute.xlu0 %1385
    %1389 = vset.pattern.permute.xlu0 0
    %1390 = vperm.xlu0 %1389, %v185
    %v1391 = vpop.permute.xlu0 %1390
    %v1393 = vmul.f32 %v18, %v1336
    %v1394 = vmul.f32 %v19, %v1341
    %v1395 = vmul.f32 %v20, %v1346
    %v1396 = vmul.f32 %v21, %v1351
    %v1397 = vmul.f32 %v22, %v1356
    %v1398 = vmul.f32 %v23, %v1361
    %v1399 = vmul.f32 %v24, %v1366
    %v1400 = vmul.f32 %v25, %v1371
    %v1401 = vmul.f32 %v26, %v1376
    %v1402 = vmul.f32 %v27, %v1381
    %v1403 = vmul.f32 %v28, %v1386
    %v1404 = vmul.f32 %v29, %v1391
    %1406 = vset.pattern.permute.xlu0 0
    %1407 = vperm.xlu0 %1406, %v1264
    %v1408 = vpop.permute.xlu0 %1407
    %1411 = vset.pattern.permute.xlu0 0
    %1412 = vperm.xlu0 %1411, %v1270
    %v1413 = vpop.permute.xlu0 %1412
    %1416 = vset.pattern.permute.xlu0 0
    %1417 = vperm.xlu0 %1416, %v1276
    %v1418 = vpop.permute.xlu0 %1417
    %1421 = vset.pattern.permute.xlu0 0
    %1422 = vperm.xlu0 %1421, %v1282
    %v1423 = vpop.permute.xlu0 %1422
    %1426 = vset.pattern.permute.xlu0 0
    %1427 = vperm.xlu0 %1426, %v1288
    %v1428 = vpop.permute.xlu0 %1427
    %1431 = vset.pattern.permute.xlu0 0
    %1432 = vperm.xlu0 %1431, %v1294
    %v1433 = vpop.permute.xlu0 %1432
    %1436 = vset.pattern.permute.xlu0 0
    %1437 = vperm.xlu0 %1436, %v1300
    %v1438 = vpop.permute.xlu0 %1437
    %1441 = vset.pattern.permute.xlu0 0
    %1442 = vperm.xlu0 %1441, %v1306
    %v1443 = vpop.permute.xlu0 %1442
    %1446 = vset.pattern.permute.xlu0 0
    %1447 = vperm.xlu0 %1446, %v1312
    %v1448 = vpop.permute.xlu0 %1447
    %1451 = vset.pattern.permute.xlu0 0
    %1452 = vperm.xlu0 %1451, %v1318
    %v1453 = vpop.permute.xlu0 %1452
    %1456 = vset.pattern.permute.xlu0 0
    %1457 = vperm.xlu0 %1456, %v1324
    %v1458 = vpop.permute.xlu0 %1457
    %1461 = vset.pattern.permute.xlu0 0
    %1462 = vperm.xlu0 %1461, %v1330
    %v1463 = vpop.permute.xlu0 %1462
    %1465 = vmatprep.subr.mxu0 0.0
    %1466 = vmatpush1.msra.mxu0 0.0
    %1467 = vmatprep.subr.mxu0 0.0
    %1468 = vmatpush1.msra.mxu0 0.0
    %1469 = vmatprep.subr.mxu0 0.0
    %1470 = vmatpush1.msra.mxu0 0.0
    %1471 = vmatprep.subr.mxu0 0.0
    %1472 = vmatpush1.msra.mxu0 0.0
    %1473 = vmatprep.subr.mxu0 0.0
    %v1474 = vand.u32 %v1404, 4294901760
    %1475 = vmatpush1.msra.mxu0 %v1474
    %1476 = vmatprep.subr.mxu0 0.0
    %v1477 = vand.u32 %v1403, 4294901760
    %1478 = vmatpush1.msra.mxu0 %v1477
    %1479 = vmatprep.subr.mxu0 0.0
    %v1480 = vand.u32 %v1402, 4294901760
    %1481 = vmatpush1.msra.mxu0 %v1480
    %1482 = vmatprep.subr.mxu0 0.0
    %v1483 = vand.u32 %v1401, 4294901760
    %1484 = vmatpush1.msra.mxu0 %v1483
    %1485 = vmatprep.subr.mxu0 0.0
    %v1486 = vand.u32 %v1400, 4294901760
    %1487 = vmatpush1.msra.mxu0 %v1486
    %1488 = vmatprep.subr.mxu0 0.0
    %v1489 = vand.u32 %v1399, 4294901760
    %1490 = vmatpush1.msra.mxu0 %v1489
    %1491 = vmatprep.subr.mxu0 0.0
    %v1492 = vand.u32 %v1398, 4294901760
    %1493 = vmatpush1.msra.mxu0 %v1492
    %1494 = vmatprep.subr.mxu0 0.0
    %v1495 = vand.u32 %v1397, 4294901760
    %1496 = vmatpush1.msra.mxu0 %v1495
    %1497 = vmatprep.subr.mxu0 0.0
    %v1498 = vand.u32 %v1396, 4294901760
    %1499 = vmatpush1.msra.mxu0 %v1498
    %1500 = vmatprep.subr.mxu0 0.0
    %v1501 = vand.u32 %v1395, 4294901760
    %1502 = vmatpush1.msra.mxu0 %v1501
    %1503 = vmatprep.subr.mxu0 0.0
    %v1504 = vand.u32 %v1394, 4294901760
    %1505 = vmatpush1.msra.mxu0 %v1504
    %1506 = vmatprep.subr.mxu0 0.0
    %v1507 = vand.u32 %v1393, 4294901760
    %1508 = vmatpush1.msra.mxu0 %v1507
    %1509 = vmatprep.subr.mxu0 0.0
    %1510 = vmatpush2.msra.mxu0 0.0
    %1511 = vmatprep.subr.mxu0 0.0
    %1512 = vmatpush2.msra.mxu0 0.0
    %1513 = vmatprep.subr.mxu0 0.0
    %1514 = vmatpush2.msra.mxu0 0.0
    %1515 = vmatprep.subr.mxu0 0.0
    %1516 = vmatpush2.msra.mxu0 0.0
    %1517 = vmatprep.subr.mxu0 0.0
    %1518 = vmatpush2.msra.mxu0 0.0
    %1519 = vmatprep.subr.mxu0 0.0
    %1520 = vmatpush2.msra.mxu0 0.0
    %1521 = vmatprep.subr.mxu0 0.0
    %1522 = vmatpush2.msra.mxu0 0.0
    %1523 = vmatprep.subr.mxu0 0.0
    %1524 = vmatpush2.msra.mxu0 0.0
    %1525 = vmatprep.subr.mxu0 0.0
    %1526 = vmatpush2.msra.mxu0 0.0
    %1527 = vmatprep.subr.mxu0 0.0
    %1528 = vmatpush2.msra.mxu0 0.0
    %1529 = vmatprep.subr.mxu0 0.0
    %1530 = vmatpush2.msra.mxu0 0.0
    %1531 = vmatprep.subr.mxu0 0.0
    %1532 = vmatpush2.msra.mxu0 0.0
    %1533 = vmatprep.subr.mxu0 0.0
    %1534 = vmatpush2.msra.mxu0 0.0
    %1535 = vmatprep.subr.mxu0 0.0
    %1536 = vmatpush2.msra.mxu0 0.0
    %1537 = vmatprep.subr.mxu0 0.0
    %1538 = vmatpush2.msra.mxu0 0.0
    %1539 = vmatprep.subr.mxu0 0.0
    %1540 = vmatpush2.msra.mxu0 0.0
    %1541 = vmatprep.mubr.f32.mxu0 0.0
    %v1542 = vand.u32 %v236, 4294901760
    %v1543 = vsub.f32 %v236, %v1542
    %v1544 = vand.u32 %v1543, 4294901760
    %v1545 = vsub.f32 %v1543, %v1544
    %v1546 = vand.u32 %v1545, 4294901760
    %1547 = vmatmul.mubr.f32.gmra.mxu0 %v1546
    %v1548 = vpop.f32.mrf.mxu0
    %v1549 = vadd.f32 %v1408, %v1548
    %v1550 = vpop.f32.mrf.mxu0
    %1551 = vmatprep.mubr.f32.mxu0 0.0
    %v1552 = vand.u32 %v239, 4294901760
    %v1553 = vsub.f32 %v239, %v1552
    %v1554 = vand.u32 %v1553, 4294901760
    %v1555 = vsub.f32 %v1553, %v1554
    %v1556 = vand.u32 %v1555, 4294901760
    %1557 = vmatmul.mubr.f32.gmra.mxu0 %v1556
    %v1558 = vpop.f32.mrf.mxu0
    %v1559 = vadd.f32 %v1413, %v1558
    %v1560 = vpop.f32.mrf.mxu0
    %1561 = vmatprep.mubr.f32.mxu0 0.0
    %v1562 = vand.u32 %v242, 4294901760
    %v1563 = vsub.f32 %v242, %v1562
    %v1564 = vand.u32 %v1563, 4294901760
    %v1565 = vsub.f32 %v1563, %v1564
    %v1566 = vand.u32 %v1565, 4294901760
    %1567 = vmatmul.mubr.f32.gmra.mxu0 %v1566
    %v1568 = vpop.f32.mrf.mxu0
    %v1569 = vadd.f32 %v1418, %v1568
    %v1570 = vpop.f32.mrf.mxu0
    %1571 = vmatprep.mubr.f32.mxu0 0.0
    %v1572 = vand.u32 %v245, 4294901760
    %v1573 = vsub.f32 %v245, %v1572
    %v1574 = vand.u32 %v1573, 4294901760
    %v1575 = vsub.f32 %v1573, %v1574
    %v1576 = vand.u32 %v1575, 4294901760
    %1577 = vmatmul.mubr.f32.gmra.mxu0 %v1576
    %v1578 = vpop.f32.mrf.mxu0
    %v1579 = vadd.f32 %v1423, %v1578
    %v1580 = vpop.f32.mrf.mxu0
    %1581 = vmatprep.mubr.f32.mxu0 0.0
    %v1582 = vand.u32 %v248, 4294901760
    %v1583 = vsub.f32 %v248, %v1582
    %v1584 = vand.u32 %v1583, 4294901760
    %v1585 = vsub.f32 %v1583, %v1584
    %v1586 = vand.u32 %v1585, 4294901760
    %1587 = vmatmul.mubr.f32.gmra.mxu0 %v1586
    %v1588 = vpop.f32.mrf.mxu0
    %v1589 = vadd.f32 %v1428, %v1588
    %v1590 = vpop.f32.mrf.mxu0
    %1591 = vmatprep.mubr.f32.mxu0 0.0
    %v1592 = vand.u32 %v251, 4294901760
    %v1593 = vsub.f32 %v251, %v1592
    %v1594 = vand.u32 %v1593, 4294901760
    %v1595 = vsub.f32 %v1593, %v1594
    %v1596 = vand.u32 %v1595, 4294901760
    %1597 = vmatmul.mubr.f32.gmra.mxu0 %v1596
    %v1598 = vpop.f32.mrf.mxu0
    %v1599 = vadd.f32 %v1433, %v1598
    %v1600 = vpop.f32.mrf.mxu0
    %1601 = vmatprep.mubr.f32.mxu0 0.0
    %v1602 = vand.u32 %v254, 4294901760
    %v1603 = vsub.f32 %v254, %v1602
    %v1604 = vand.u32 %v1603, 4294901760
    %v1605 = vsub.f32 %v1603, %v1604
    %v1606 = vand.u32 %v1605, 4294901760
    %1607 = vmatmul.mubr.f32.gmra.mxu0 %v1606
    %v1608 = vpop.f32.mrf.mxu0
    %v1609 = vadd.f32 %v1438, %v1608
    %v1610 = vpop.f32.mrf.mxu0
    %1611 = vmatprep.mubr.f32.mxu0 0.0
    %v1612 = vand.u32 %v257, 4294901760
    %v1613 = vsub.f32 %v257, %v1612
    %v1614 = vand.u32 %v1613, 4294901760
    %v1615 = vsub.f32 %v1613, %v1614
    %v1616 = vand.u32 %v1615, 4294901760
    %1617 = vmatmul.mubr.f32.gmra.mxu0 %v1616
    %v1618 = vpop.f32.mrf.mxu0
    %v1619 = vadd.f32 %v1443, %v1618
    %v1620 = vpop.f32.mrf.mxu0
    %1621 = vmatprep.mubr.f32.mxu0 0.0
    %v1622 = vand.u32 %v260, 4294901760
    %v1623 = vsub.f32 %v260, %v1622
    %v1624 = vand.u32 %v1623, 4294901760
    %v1625 = vsub.f32 %v1623, %v1624
    %v1626 = vand.u32 %v1625, 4294901760
    %1627 = vmatmul.mubr.f32.gmra.mxu0 %v1626
    %v1628 = vpop.f32.mrf.mxu0
    %v1629 = vadd.f32 %v1448, %v1628
    %v1630 = vpop.f32.mrf.mxu0
    %1631 = vmatprep.mubr.f32.mxu0 0.0
    %v1632 = vand.u32 %v263, 4294901760
    %v1633 = vsub.f32 %v263, %v1632
    %v1634 = vand.u32 %v1633, 4294901760
    %v1635 = vsub.f32 %v1633, %v1634
    %v1636 = vand.u32 %v1635, 4294901760
    %1637 = vmatmul.mubr.f32.gmra.mxu0 %v1636
    %v1638 = vpop.f32.mrf.mxu0
    %v1639 = vadd.f32 %v1453, %v1638
    %v1640 = vpop.f32.mrf.mxu0
    %1641 = vmatprep.mubr.f32.mxu0 0.0
    %v1642 = vand.u32 %v266, 4294901760
    %v1643 = vsub.f32 %v266, %v1642
    %v1644 = vand.u32 %v1643, 4294901760
    %v1645 = vsub.f32 %v1643, %v1644
    %v1646 = vand.u32 %v1645, 4294901760
    %1647 = vmatmul.mubr.f32.gmra.mxu0 %v1646
    %v1648 = vpop.f32.mrf.mxu0
    %v1649 = vadd.f32 %v1458, %v1648
    %v1650 = vpop.f32.mrf.mxu0
    %1651 = vmatprep.mubr.f32.mxu0 0.0
    %v1652 = vand.u32 %v269, 4294901760
    %v1653 = vsub.f32 %v269, %v1652
    %v1654 = vand.u32 %v1653, 4294901760
    %v1655 = vsub.f32 %v1653, %v1654
    %v1656 = vand.u32 %v1655, 4294901760
    %1657 = vmatmul.mubr.f32.gmra.mxu0 %v1656
    %v1658 = vpop.f32.mrf.mxu0
    %v1659 = vadd.f32 %v1463, %v1658
    %v1660 = vpop.f32.mrf.mxu0
    %1661 = vdwg.mxu0
    %1662 = vmatprep.subr.mxu0 0.0
    %1663 = vmatpush1.msra.mxu0 0.0
    %1664 = vmatprep.subr.mxu0 0.0
    %1665 = vmatpush1.msra.mxu0 0.0
    %1666 = vmatprep.subr.mxu0 0.0
    %1667 = vmatpush1.msra.mxu0 0.0
    %1668 = vmatprep.subr.mxu0 0.0
    %1669 = vmatpush1.msra.mxu0 0.0
    %1670 = vmatprep.subr.mxu0 0.0
    %v1671 = vand.u32 %v1404, 4294901760
    %v1672 = vsub.f32 %v1404, %v1671
    %v1673 = vand.u32 %v1672, 4294901760
    %v1674 = vsub.f32 %v1672, %v1673
    %v1675 = vand.u32 %v1674, 4294901760
    %1676 = vmatpush1.msra.mxu0 %v1675
    %1677 = vmatprep.subr.mxu0 0.0
    %v1678 = vand.u32 %v1403, 4294901760
    %v1679 = vsub.f32 %v1403, %v1678
    %v1680 = vand.u32 %v1679, 4294901760
    %v1681 = vsub.f32 %v1679, %v1680
    %v1682 = vand.u32 %v1681, 4294901760
    %1683 = vmatpush1.msra.mxu0 %v1682
    %1684 = vmatprep.subr.mxu0 0.0
    %v1685 = vand.u32 %v1402, 4294901760
    %v1686 = vsub.f32 %v1402, %v1685
    %v1687 = vand.u32 %v1686, 4294901760
    %v1688 = vsub.f32 %v1686, %v1687
    %v1689 = vand.u32 %v1688, 4294901760
    %1690 = vmatpush1.msra.mxu0 %v1689
    %1691 = vmatprep.subr.mxu0 0.0
    %v1692 = vand.u32 %v1401, 4294901760
    %v1693 = vsub.f32 %v1401, %v1692
    %v1694 = vand.u32 %v1693, 4294901760
    %v1695 = vsub.f32 %v1693, %v1694
    %v1696 = vand.u32 %v1695, 4294901760
    %1697 = vmatpush1.msra.mxu0 %v1696
    %1698 = vmatprep.subr.mxu0 0.0
    %v1699 = vand.u32 %v1400, 4294901760
    %v1700 = vsub.f32 %v1400, %v1699
    %v1701 = vand.u32 %v1700, 4294901760
    %v1702 = vsub.f32 %v1700, %v1701
    %v1703 = vand.u32 %v1702, 4294901760
    %1704 = vmatpush1.msra.mxu0 %v1703
    %1705 = vmatprep.subr.mxu0 0.0
    %v1706 = vand.u32 %v1399, 4294901760
    %v1707 = vsub.f32 %v1399, %v1706
    %v1708 = vand.u32 %v1707, 4294901760
    %v1709 = vsub.f32 %v1707, %v1708
    %v1710 = vand.u32 %v1709, 4294901760
    %1711 = vmatpush1.msra.mxu0 %v1710
    %1712 = vmatprep.subr.mxu0 0.0
    %v1713 = vand.u32 %v1398, 4294901760
    %v1714 = vsub.f32 %v1398, %v1713
    %v1715 = vand.u32 %v1714, 4294901760
    %v1716 = vsub.f32 %v1714, %v1715
    %v1717 = vand.u32 %v1716, 4294901760
    %1718 = vmatpush1.msra.mxu0 %v1717
    %1719 = vmatprep.subr.mxu0 0.0
    %v1720 = vand.u32 %v1397, 4294901760
    %v1721 = vsub.f32 %v1397, %v1720
    %v1722 = vand.u32 %v1721, 4294901760
    %v1723 = vsub.f32 %v1721, %v1722
    %v1724 = vand.u32 %v1723, 4294901760
    %1725 = vmatpush1.msra.mxu0 %v1724
    %1726 = vmatprep.subr.mxu0 0.0
    %v1727 = vand.u32 %v1396, 4294901760
    %v1728 = vsub.f32 %v1396, %v1727
    %v1729 = vand.u32 %v1728, 4294901760
    %v1730 = vsub.f32 %v1728, %v1729
    %v1731 = vand.u32 %v1730, 4294901760
    %1732 = vmatpush1.msra.mxu0 %v1731
    %1733 = vmatprep.subr.mxu0 0.0
    %v1734 = vand.u32 %v1395, 4294901760
    %v1735 = vsub.f32 %v1395, %v1734
    %v1736 = vand.u32 %v1735, 4294901760
    %v1737 = vsub.f32 %v1735, %v1736
    %v1738 = vand.u32 %v1737, 4294901760
    %1739 = vmatpush1.msra.mxu0 %v1738
    %1740 = vmatprep.subr.mxu0 0.0
    %v1741 = vand.u32 %v1394, 4294901760
    %v1742 = vsub.f32 %v1394, %v1741
    %v1743 = vand.u32 %v1742, 4294901760
    %v1744 = vsub.f32 %v1742, %v1743
    %v1745 = vand.u32 %v1744, 4294901760
    %1746 = vmatpush1.msra.mxu0 %v1745
    %1747 = vmatprep.subr.mxu0 0.0
    %v1748 = vand.u32 %v1393, 4294901760
    %v1749 = vsub.f32 %v1393, %v1748
    %v1750 = vand.u32 %v1749, 4294901760
    %v1751 = vsub.f32 %v1749, %v1750
    %v1752 = vand.u32 %v1751, 4294901760
    %1753 = vmatpush1.msra.mxu0 %v1752
    %1754 = vmatprep.subr.mxu0 0.0
    %1755 = vmatpush2.msra.mxu0 0.0
    %1756 = vmatprep.subr.mxu0 0.0
    %1757 = vmatpush2.msra.mxu0 0.0
    %1758 = vmatprep.subr.mxu0 0.0
    %1759 = vmatpush2.msra.mxu0 0.0
    %1760 = vmatprep.subr.mxu0 0.0
    %1761 = vmatpush2.msra.mxu0 0.0
    %1762 = vmatprep.subr.mxu0 0.0
    %1763 = vmatpush2.msra.mxu0 0.0
    %1764 = vmatprep.subr.mxu0 0.0
    %1765 = vmatpush2.msra.mxu0 0.0
    %1766 = vmatprep.subr.mxu0 0.0
    %1767 = vmatpush2.msra.mxu0 0.0
    %1768 = vmatprep.subr.mxu0 0.0
    %1769 = vmatpush2.msra.mxu0 0.0
    %1770 = vmatprep.subr.mxu0 0.0
    %1771 = vmatpush2.msra.mxu0 0.0
    %1772 = vmatprep.subr.mxu0 0.0
    %1773 = vmatpush2.msra.mxu0 0.0
    %1774 = vmatprep.subr.mxu0 0.0
    %1775 = vmatpush2.msra.mxu0 0.0
    %1776 = vmatprep.subr.mxu0 0.0
    %1777 = vmatpush2.msra.mxu0 0.0
    %1778 = vmatprep.subr.mxu0 0.0
    %1779 = vmatpush2.msra.mxu0 0.0
    %1780 = vmatprep.subr.mxu0 0.0
    %1781 = vmatpush2.msra.mxu0 0.0
    %1782 = vmatprep.subr.mxu0 0.0
    %1783 = vmatpush2.msra.mxu0 0.0
    %1784 = vmatprep.subr.mxu0 0.0
    %1785 = vmatpush2.msra.mxu0 0.0
    %1786 = vmatprep.mubr.f32.mxu0 0.0
    %v1787 = vand.u32 %v236, 4294901760
    %1788 = vmatmul.mubr.f32.gmra.mxu0 %v1787
    %v1789 = vpop.f32.mrf.mxu0
    %v1790 = vadd.f32 %v1549, %v1789
    %v1791 = vpop.f32.mrf.mxu0
    %1792 = vmatprep.mubr.f32.mxu0 0.0
    %v1793 = vand.u32 %v239, 4294901760
    %1794 = vmatmul.mubr.f32.gmra.mxu0 %v1793
    %v1795 = vpop.f32.mrf.mxu0
    %v1796 = vadd.f32 %v1559, %v1795
    %v1797 = vpop.f32.mrf.mxu0
    %1798 = vmatprep.mubr.f32.mxu0 0.0
    %v1799 = vand.u32 %v242, 4294901760
    %1800 = vmatmul.mubr.f32.gmra.mxu0 %v1799
    %v1801 = vpop.f32.mrf.mxu0
    %v1802 = vadd.f32 %v1569, %v1801
    %v1803 = vpop.f32.mrf.mxu0
    %1804 = vmatprep.mubr.f32.mxu0 0.0
    %v1805 = vand.u32 %v245, 4294901760
    %1806 = vmatmul.mubr.f32.gmra.mxu0 %v1805
    %v1807 = vpop.f32.mrf.mxu0
    %v1808 = vadd.f32 %v1579, %v1807
    %v1809 = vpop.f32.mrf.mxu0
    %1810 = vmatprep.mubr.f32.mxu0 0.0
    %v1811 = vand.u32 %v248, 4294901760
    %1812 = vmatmul.mubr.f32.gmra.mxu0 %v1811
    %v1813 = vpop.f32.mrf.mxu0
    %v1814 = vadd.f32 %v1589, %v1813
    %v1815 = vpop.f32.mrf.mxu0
    %1816 = vmatprep.mubr.f32.mxu0 0.0
    %v1817 = vand.u32 %v251, 4294901760
    %1818 = vmatmul.mubr.f32.gmra.mxu0 %v1817
    %v1819 = vpop.f32.mrf.mxu0
    %v1820 = vadd.f32 %v1599, %v1819
    %v1821 = vpop.f32.mrf.mxu0
    %1822 = vmatprep.mubr.f32.mxu0 0.0
    %v1823 = vand.u32 %v254, 4294901760
    %1824 = vmatmul.mubr.f32.gmra.mxu0 %v1823
    %v1825 = vpop.f32.mrf.mxu0
    %v1826 = vadd.f32 %v1609, %v1825
    %v1827 = vpop.f32.mrf.mxu0
    %1828 = vmatprep.mubr.f32.mxu0 0.0
    %v1829 = vand.u32 %v257, 4294901760
    %1830 = vmatmul.mubr.f32.gmra.mxu0 %v1829
    %v1831 = vpop.f32.mrf.mxu0
    %v1832 = vadd.f32 %v1619, %v1831
    %v1833 = vpop.f32.mrf.mxu0
    %1834 = vmatprep.mubr.f32.mxu0 0.0
    %v1835 = vand.u32 %v260, 4294901760
    %1836 = vmatmul.mubr.f32.gmra.mxu0 %v1835
    %v1837 = vpop.f32.mrf.mxu0
    %v1838 = vadd.f32 %v1629, %v1837
    %v1839 = vpop.f32.mrf.mxu0
    %1840 = vmatprep.mubr.f32.mxu0 0.0
    %v1841 = vand.u32 %v263, 4294901760
    %1842 = vmatmul.mubr.f32.gmra.mxu0 %v1841
    %v1843 = vpop.f32.mrf.mxu0
    %v1844 = vadd.f32 %v1639, %v1843
    %v1845 = vpop.f32.mrf.mxu0
    %1846 = vmatprep.mubr.f32.mxu0 0.0
    %v1847 = vand.u32 %v266, 4294901760
    %1848 = vmatmul.mubr.f32.gmra.mxu0 %v1847
    %v1849 = vpop.f32.mrf.mxu0
    %v1850 = vadd.f32 %v1649, %v1849
    %v1851 = vpop.f32.mrf.mxu0
    %1852 = vmatprep.mubr.f32.mxu0 0.0
    %v1853 = vand.u32 %v269, 4294901760
    %1854 = vmatmul.mubr.f32.gmra.mxu0 %v1853
    %v1855 = vpop.f32.mrf.mxu0
    %v1856 = vadd.f32 %v1659, %v1855
    %v1857 = vpop.f32.mrf.mxu0
    %1858 = vdwg.mxu0
    %1859 = vmatprep.subr.mxu0 0.0
    %1860 = vmatpush1.msra.mxu0 0.0
    %1861 = vmatprep.subr.mxu0 0.0
    %1862 = vmatpush1.msra.mxu0 0.0
    %1863 = vmatprep.subr.mxu0 0.0
    %1864 = vmatpush1.msra.mxu0 0.0
    %1865 = vmatprep.subr.mxu0 0.0
    %1866 = vmatpush1.msra.mxu0 0.0
    %1867 = vmatprep.subr.mxu0 0.0
    %v1868 = vand.u32 %v1404, 4294901760
    %v1869 = vsub.f32 %v1404, %v1868
    %1870 = vmatpush1.msra.mxu0 %v1869
    %1871 = vmatprep.subr.mxu0 0.0
    %v1872 = vand.u32 %v1403, 4294901760
    %v1873 = vsub.f32 %v1403, %v1872
    %1874 = vmatpush1.msra.mxu0 %v1873
    %1875 = vmatprep.subr.mxu0 0.0
    %v1876 = vand.u32 %v1402, 4294901760
    %v1877 = vsub.f32 %v1402, %v1876
    %1878 = vmatpush1.msra.mxu0 %v1877
    %1879 = vmatprep.subr.mxu0 0.0
    %v1880 = vand.u32 %v1401, 4294901760
    %v1881 = vsub.f32 %v1401, %v1880
    %1882 = vmatpush1.msra.mxu0 %v1881
    %1883 = vmatprep.subr.mxu0 0.0
    %v1884 = vand.u32 %v1400, 4294901760
    %v1885 = vsub.f32 %v1400, %v1884
    %1886 = vmatpush1.msra.mxu0 %v1885
    %1887 = vmatprep.subr.mxu0 0.0
    %v1888 = vand.u32 %v1399, 4294901760
    %v1889 = vsub.f32 %v1399, %v1888
    %1890 = vmatpush1.msra.mxu0 %v1889
    %1891 = vmatprep.subr.mxu0 0.0
    %v1892 = vand.u32 %v1398, 4294901760
    %v1893 = vsub.f32 %v1398, %v1892
    %1894 = vmatpush1.msra.mxu0 %v1893
    %1895 = vmatprep.subr.mxu0 0.0
    %v1896 = vand.u32 %v1397, 4294901760
    %v1897 = vsub.f32 %v1397, %v1896
    %1898 = vmatpush1.msra.mxu0 %v1897
    %1899 = vmatprep.subr.mxu0 0.0
    %v1900 = vand.u32 %v1396, 4294901760
    %v1901 = vsub.f32 %v1396, %v1900
    %1902 = vmatpush1.msra.mxu0 %v1901
    %1903 = vmatprep.subr.mxu0 0.0
    %v1904 = vand.u32 %v1395, 4294901760
    %v1905 = vsub.f32 %v1395, %v1904
    %1906 = vmatpush1.msra.mxu0 %v1905
    %1907 = vmatprep.subr.mxu0 0.0
    %v1908 = vand.u32 %v1394, 4294901760
    %v1909 = vsub.f32 %v1394, %v1908
    %1910 = vmatpush1.msra.mxu0 %v1909
    %1911 = vmatprep.subr.mxu0 0.0
    %v1912 = vand.u32 %v1393, 4294901760
    %v1913 = vsub.f32 %v1393, %v1912
    %1914 = vmatpush1.msra.mxu0 %v1913
    %1915 = vmatprep.subr.mxu0 0.0
    %1916 = vmatpush2.msra.mxu0 0.0
    %1917 = vmatprep.subr.mxu0 0.0
    %1918 = vmatpush2.msra.mxu0 0.0
    %1919 = vmatprep.subr.mxu0 0.0
    %1920 = vmatpush2.msra.mxu0 0.0
    %1921 = vmatprep.subr.mxu0 0.0
    %1922 = vmatpush2.msra.mxu0 0.0
    %1923 = vmatprep.subr.mxu0 0.0
    %1924 = vmatpush2.msra.mxu0 0.0
    %1925 = vmatprep.subr.mxu0 0.0
    %1926 = vmatpush2.msra.mxu0 0.0
    %1927 = vmatprep.subr.mxu0 0.0
    %1928 = vmatpush2.msra.mxu0 0.0
    %1929 = vmatprep.subr.mxu0 0.0
    %1930 = vmatpush2.msra.mxu0 0.0
    %1931 = vmatprep.subr.mxu0 0.0
    %1932 = vmatpush2.msra.mxu0 0.0
    %1933 = vmatprep.subr.mxu0 0.0
    %1934 = vmatpush2.msra.mxu0 0.0
    %1935 = vmatprep.subr.mxu0 0.0
    %1936 = vmatpush2.msra.mxu0 0.0
    %1937 = vmatprep.subr.mxu0 0.0
    %1938 = vmatpush2.msra.mxu0 0.0
    %1939 = vmatprep.subr.mxu0 0.0
    %1940 = vmatpush2.msra.mxu0 0.0
    %1941 = vmatprep.subr.mxu0 0.0
    %1942 = vmatpush2.msra.mxu0 0.0
    %1943 = vmatprep.subr.mxu0 0.0
    %1944 = vmatpush2.msra.mxu0 0.0
    %1945 = vmatprep.subr.mxu0 0.0
    %1946 = vmatpush2.msra.mxu0 0.0
    %1947 = vmatprep.mubr.f32.mxu0 0.0
    %v1948 = vand.u32 %v236, 4294901760
    %v1949 = vsub.f32 %v236, %v1948
    %1950 = vmatmul.mubr.f32.gmra.mxu0 %v1949
    %v1951 = vpop.f32.mrf.mxu0
    %v1952 = vadd.f32 %v1790, %v1951
    %v1953 = vpop.f32.mrf.mxu0
    %1954 = vmatprep.mubr.f32.mxu0 0.0
    %v1955 = vand.u32 %v239, 4294901760
    %v1956 = vsub.f32 %v239, %v1955
    %1957 = vmatmul.mubr.f32.gmra.mxu0 %v1956
    %v1958 = vpop.f32.mrf.mxu0
    %v1959 = vadd.f32 %v1796, %v1958
    %v1960 = vpop.f32.mrf.mxu0
    %1961 = vmatprep.mubr.f32.mxu0 0.0
    %v1962 = vand.u32 %v242, 4294901760
    %v1963 = vsub.f32 %v242, %v1962
    %1964 = vmatmul.mubr.f32.gmra.mxu0 %v1963
    %v1965 = vpop.f32.mrf.mxu0
    %v1966 = vadd.f32 %v1802, %v1965
    %v1967 = vpop.f32.mrf.mxu0
    %1968 = vmatprep.mubr.f32.mxu0 0.0
    %v1969 = vand.u32 %v245, 4294901760
    %v1970 = vsub.f32 %v245, %v1969
    %1971 = vmatmul.mubr.f32.gmra.mxu0 %v1970
    %v1972 = vpop.f32.mrf.mxu0
    %v1973 = vadd.f32 %v1808, %v1972
    %v1974 = vpop.f32.mrf.mxu0
    %1975 = vmatprep.mubr.f32.mxu0 0.0
    %v1976 = vand.u32 %v248, 4294901760
    %v1977 = vsub.f32 %v248, %v1976
    %1978 = vmatmul.mubr.f32.gmra.mxu0 %v1977
    %v1979 = vpop.f32.mrf.mxu0
    %v1980 = vadd.f32 %v1814, %v1979
    %v1981 = vpop.f32.mrf.mxu0
    %1982 = vmatprep.mubr.f32.mxu0 0.0
    %v1983 = vand.u32 %v251, 4294901760
    %v1984 = vsub.f32 %v251, %v1983
    %1985 = vmatmul.mubr.f32.gmra.mxu0 %v1984
    %v1986 = vpop.f32.mrf.mxu0
    %v1987 = vadd.f32 %v1820, %v1986
    %v1988 = vpop.f32.mrf.mxu0
    %1989 = vmatprep.mubr.f32.mxu0 0.0
    %v1990 = vand.u32 %v254, 4294901760
    %v1991 = vsub.f32 %v254, %v1990
    %1992 = vmatmul.mubr.f32.gmra.mxu0 %v1991
    %v1993 = vpop.f32.mrf.mxu0
    %v1994 = vadd.f32 %v1826, %v1993
    %v1995 = vpop.f32.mrf.mxu0
    %1996 = vmatprep.mubr.f32.mxu0 0.0
    %v1997 = vand.u32 %v257, 4294901760
    %v1998 = vsub.f32 %v257, %v1997
    %1999 = vmatmul.mubr.f32.gmra.mxu0 %v1998
    %v2000 = vpop.f32.mrf.mxu0
    %v2001 = vadd.f32 %v1832, %v2000
    %v2002 = vpop.f32.mrf.mxu0
    %2003 = vmatprep.mubr.f32.mxu0 0.0
    %v2004 = vand.u32 %v260, 4294901760
    %v2005 = vsub.f32 %v260, %v2004
    %2006 = vmatmul.mubr.f32.gmra.mxu0 %v2005
    %v2007 = vpop.f32.mrf.mxu0
    %v2008 = vadd.f32 %v1838, %v2007
    %v2009 = vpop.f32.mrf.mxu0
    %2010 = vmatprep.mubr.f32.mxu0 0.0
    %v2011 = vand.u32 %v263, 4294901760
    %v2012 = vsub.f32 %v263, %v2011
    %2013 = vmatmul.mubr.f32.gmra.mxu0 %v2012
    %v2014 = vpop.f32.mrf.mxu0
    %v2015 = vadd.f32 %v1844, %v2014
    %v2016 = vpop.f32.mrf.mxu0
    %2017 = vmatprep.mubr.f32.mxu0 0.0
    %v2018 = vand.u32 %v266, 4294901760
    %v2019 = vsub.f32 %v266, %v2018
    %2020 = vmatmul.mubr.f32.gmra.mxu0 %v2019
    %v2021 = vpop.f32.mrf.mxu0
    %v2022 = vadd.f32 %v1850, %v2021
    %v2023 = vpop.f32.mrf.mxu0
    %2024 = vmatprep.mubr.f32.mxu0 0.0
    %v2025 = vand.u32 %v269, 4294901760
    %v2026 = vsub.f32 %v269, %v2025
    %2027 = vmatmul.mubr.f32.gmra.mxu0 %v2026
    %v2028 = vpop.f32.mrf.mxu0
    %v2029 = vadd.f32 %v1856, %v2028
    %v2030 = vpop.f32.mrf.mxu0
    %2031 = vdwg.mxu0
    %2032 = vmatprep.subr.mxu0 0.0
    %2033 = vmatpush1.msra.mxu0 0.0
    %2034 = vmatprep.subr.mxu0 0.0
    %2035 = vmatpush1.msra.mxu0 0.0
    %2036 = vmatprep.subr.mxu0 0.0
    %2037 = vmatpush1.msra.mxu0 0.0
    %2038 = vmatprep.subr.mxu0 0.0
    %2039 = vmatpush1.msra.mxu0 0.0
    %2040 = vmatprep.subr.mxu0 0.0
    %v2041 = vand.u32 %v1404, 4294901760
    %2042 = vmatpush1.msra.mxu0 %v2041
    %2043 = vmatprep.subr.mxu0 0.0
    %v2044 = vand.u32 %v1403, 4294901760
    %2045 = vmatpush1.msra.mxu0 %v2044
    %2046 = vmatprep.subr.mxu0 0.0
    %v2047 = vand.u32 %v1402, 4294901760
    %2048 = vmatpush1.msra.mxu0 %v2047
    %2049 = vmatprep.subr.mxu0 0.0
    %v2050 = vand.u32 %v1401, 4294901760
    %2051 = vmatpush1.msra.mxu0 %v2050
    %2052 = vmatprep.subr.mxu0 0.0
    %v2053 = vand.u32 %v1400, 4294901760
    %2054 = vmatpush1.msra.mxu0 %v2053
    %2055 = vmatprep.subr.mxu0 0.0
    %v2056 = vand.u32 %v1399, 4294901760
    %2057 = vmatpush1.msra.mxu0 %v2056
    %2058 = vmatprep.subr.mxu0 0.0
    %v2059 = vand.u32 %v1398, 4294901760
    %2060 = vmatpush1.msra.mxu0 %v2059
    %2061 = vmatprep.subr.mxu0 0.0
    %v2062 = vand.u32 %v1397, 4294901760
    %2063 = vmatpush1.msra.mxu0 %v2062
    %2064 = vmatprep.subr.mxu0 0.0
    %v2065 = vand.u32 %v1396, 4294901760
    %2066 = vmatpush1.msra.mxu0 %v2065
    %2067 = vmatprep.subr.mxu0 0.0
    %v2068 = vand.u32 %v1395, 4294901760
    %2069 = vmatpush1.msra.mxu0 %v2068
    %2070 = vmatprep.subr.mxu0 0.0
    %v2071 = vand.u32 %v1394, 4294901760
    %2072 = vmatpush1.msra.mxu0 %v2071
    %2073 = vmatprep.subr.mxu0 0.0
    %v2074 = vand.u32 %v1393, 4294901760
    %2075 = vmatpush1.msra.mxu0 %v2074
    %2076 = vmatprep.subr.mxu0 0.0
    %2077 = vmatpush2.msra.mxu0 0.0
    %2078 = vmatprep.subr.mxu0 0.0
    %2079 = vmatpush2.msra.mxu0 0.0
    %2080 = vmatprep.subr.mxu0 0.0
    %2081 = vmatpush2.msra.mxu0 0.0
    %2082 = vmatprep.subr.mxu0 0.0
    %2083 = vmatpush2.msra.mxu0 0.0
    %2084 = vmatprep.subr.mxu0 0.0
    %2085 = vmatpush2.msra.mxu0 0.0
    %2086 = vmatprep.subr.mxu0 0.0
    %2087 = vmatpush2.msra.mxu0 0.0
    %2088 = vmatprep.subr.mxu0 0.0
    %2089 = vmatpush2.msra.mxu0 0.0
    %2090 = vmatprep.subr.mxu0 0.0
    %2091 = vmatpush2.msra.mxu0 0.0
    %2092 = vmatprep.subr.mxu0 0.0
    %2093 = vmatpush2.msra.mxu0 0.0
    %2094 = vmatprep.subr.mxu0 0.0
    %2095 = vmatpush2.msra.mxu0 0.0
    %2096 = vmatprep.subr.mxu0 0.0
    %2097 = vmatpush2.msra.mxu0 0.0
    %2098 = vmatprep.subr.mxu0 0.0
    %2099 = vmatpush2.msra.mxu0 0.0
    %2100 = vmatprep.subr.mxu0 0.0
    %2101 = vmatpush2.msra.mxu0 0.0
    %2102 = vmatprep.subr.mxu0 0.0
    %2103 = vmatpush2.msra.mxu0 0.0
    %2104 = vmatprep.subr.mxu0 0.0
    %2105 = vmatpush2.msra.mxu0 0.0
    %2106 = vmatprep.subr.mxu0 0.0
    %2107 = vmatpush2.msra.mxu0 0.0
    %2108 = vmatprep.mubr.f32.mxu0 0.0
    %v2109 = vand.u32 %v236, 4294901760
    %v2110 = vsub.f32 %v236, %v2109
    %v2111 = vand.u32 %v2110, 4294901760
    %2112 = vmatmul.mubr.f32.gmra.mxu0 %v2111
    %v2113 = vpop.f32.mrf.mxu0
    %v2114 = vadd.f32 %v1952, %v2113
    %v2115 = vpop.f32.mrf.mxu0
    %2116 = vmatprep.mubr.f32.mxu0 0.0
    %v2117 = vand.u32 %v239, 4294901760
    %v2118 = vsub.f32 %v239, %v2117
    %v2119 = vand.u32 %v2118, 4294901760
    %2120 = vmatmul.mubr.f32.gmra.mxu0 %v2119
    %v2121 = vpop.f32.mrf.mxu0
    %v2122 = vadd.f32 %v1959, %v2121
    %v2123 = vpop.f32.mrf.mxu0
    %2124 = vmatprep.mubr.f32.mxu0 0.0
    %v2125 = vand.u32 %v242, 4294901760
    %v2126 = vsub.f32 %v242, %v2125
    %v2127 = vand.u32 %v2126, 4294901760
    %2128 = vmatmul.mubr.f32.gmra.mxu0 %v2127
    %v2129 = vpop.f32.mrf.mxu0
    %v2130 = vadd.f32 %v1966, %v2129
    %v2131 = vpop.f32.mrf.mxu0
    %2132 = vmatprep.mubr.f32.mxu0 0.0
    %v2133 = vand.u32 %v245, 4294901760
    %v2134 = vsub.f32 %v245, %v2133
    %v2135 = vand.u32 %v2134, 4294901760
    %2136 = vmatmul.mubr.f32.gmra.mxu0 %v2135
    %v2137 = vpop.f32.mrf.mxu0
    %v2138 = vadd.f32 %v1973, %v2137
    %v2139 = vpop.f32.mrf.mxu0
    %2140 = vmatprep.mubr.f32.mxu0 0.0
    %v2141 = vand.u32 %v248, 4294901760
    %v2142 = vsub.f32 %v248, %v2141
    %v2143 = vand.u32 %v2142, 4294901760
    %2144 = vmatmul.mubr.f32.gmra.mxu0 %v2143
    %v2145 = vpop.f32.mrf.mxu0
    %v2146 = vadd.f32 %v1980, %v2145
    %v2147 = vpop.f32.mrf.mxu0
    %2148 = vmatprep.mubr.f32.mxu0 0.0
    %v2149 = vand.u32 %v251, 4294901760
    %v2150 = vsub.f32 %v251, %v2149
    %v2151 = vand.u32 %v2150, 4294901760
    %2152 = vmatmul.mubr.f32.gmra.mxu0 %v2151
    %v2153 = vpop.f32.mrf.mxu0
    %v2154 = vadd.f32 %v1987, %v2153
    %v2155 = vpop.f32.mrf.mxu0
    %2156 = vmatprep.mubr.f32.mxu0 0.0
    %v2157 = vand.u32 %v254, 4294901760
    %v2158 = vsub.f32 %v254, %v2157
    %v2159 = vand.u32 %v2158, 4294901760
    %2160 = vmatmul.mubr.f32.gmra.mxu0 %v2159
    %v2161 = vpop.f32.mrf.mxu0
    %v2162 = vadd.f32 %v1994, %v2161
    %v2163 = vpop.f32.mrf.mxu0
    %2164 = vmatprep.mubr.f32.mxu0 0.0
    %v2165 = vand.u32 %v257, 4294901760
    %v2166 = vsub.f32 %v257, %v2165
    %v2167 = vand.u32 %v2166, 4294901760
    %2168 = vmatmul.mubr.f32.gmra.mxu0 %v2167
    %v2169 = vpop.f32.mrf.mxu0
    %v2170 = vadd.f32 %v2001, %v2169
    %v2171 = vpop.f32.mrf.mxu0
    %2172 = vmatprep.mubr.f32.mxu0 0.0
    %v2173 = vand.u32 %v260, 4294901760
    %v2174 = vsub.f32 %v260, %v2173
    %v2175 = vand.u32 %v2174, 4294901760
    %2176 = vmatmul.mubr.f32.gmra.mxu0 %v2175
    %v2177 = vpop.f32.mrf.mxu0
    %v2178 = vadd.f32 %v2008, %v2177
    %v2179 = vpop.f32.mrf.mxu0
    %2180 = vmatprep.mubr.f32.mxu0 0.0
    %v2181 = vand.u32 %v263, 4294901760
    %v2182 = vsub.f32 %v263, %v2181
    %v2183 = vand.u32 %v2182, 4294901760
    %2184 = vmatmul.mubr.f32.gmra.mxu0 %v2183
    %v2185 = vpop.f32.mrf.mxu0
    %v2186 = vadd.f32 %v2015, %v2185
    %v2187 = vpop.f32.mrf.mxu0
    %2188 = vmatprep.mubr.f32.mxu0 0.0
    %v2189 = vand.u32 %v266, 4294901760
    %v2190 = vsub.f32 %v266, %v2189
    %v2191 = vand.u32 %v2190, 4294901760
    %2192 = vmatmul.mubr.f32.gmra.mxu0 %v2191
    %v2193 = vpop.f32.mrf.mxu0
    %v2194 = vadd.f32 %v2022, %v2193
    %v2195 = vpop.f32.mrf.mxu0
    %2196 = vmatprep.mubr.f32.mxu0 0.0
    %v2197 = vand.u32 %v269, 4294901760
    %v2198 = vsub.f32 %v269, %v2197
    %v2199 = vand.u32 %v2198, 4294901760
    %2200 = vmatmul.mubr.f32.gmra.mxu0 %v2199
    %v2201 = vpop.f32.mrf.mxu0
    %v2202 = vadd.f32 %v2029, %v2201
    %v2203 = vpop.f32.mrf.mxu0
    %2204 = vdwg.mxu0
    %2205 = vmatprep.subr.mxu0 0.0
    %2206 = vmatpush1.msra.mxu0 0.0
    %2207 = vmatprep.subr.mxu0 0.0
    %2208 = vmatpush1.msra.mxu0 0.0
    %2209 = vmatprep.subr.mxu0 0.0
    %2210 = vmatpush1.msra.mxu0 0.0
    %2211 = vmatprep.subr.mxu0 0.0
    %2212 = vmatpush1.msra.mxu0 0.0
    %2213 = vmatprep.subr.mxu0 0.0
    %v2214 = vand.u32 %v1404, 4294901760
    %v2215 = vsub.f32 %v1404, %v2214
    %v2216 = vand.u32 %v2215, 4294901760
    %2217 = vmatpush1.msra.mxu0 %v2216
    %2218 = vmatprep.subr.mxu0 0.0
    %v2219 = vand.u32 %v1403, 4294901760
    %v2220 = vsub.f32 %v1403, %v2219
    %v2221 = vand.u32 %v2220, 4294901760
    %2222 = vmatpush1.msra.mxu0 %v2221
    %2223 = vmatprep.subr.mxu0 0.0
    %v2224 = vand.u32 %v1402, 4294901760
    %v2225 = vsub.f32 %v1402, %v2224
    %v2226 = vand.u32 %v2225, 4294901760
    %2227 = vmatpush1.msra.mxu0 %v2226
    %2228 = vmatprep.subr.mxu0 0.0
    %v2229 = vand.u32 %v1401, 4294901760
    %v2230 = vsub.f32 %v1401, %v2229
    %v2231 = vand.u32 %v2230, 4294901760
    %2232 = vmatpush1.msra.mxu0 %v2231
    %2233 = vmatprep.subr.mxu0 0.0
    %v2234 = vand.u32 %v1400, 4294901760
    %v2235 = vsub.f32 %v1400, %v2234
    %v2236 = vand.u32 %v2235, 4294901760
    %2237 = vmatpush1.msra.mxu0 %v2236
    %2238 = vmatprep.subr.mxu0 0.0
    %v2239 = vand.u32 %v1399, 4294901760
    %v2240 = vsub.f32 %v1399, %v2239
    %v2241 = vand.u32 %v2240, 4294901760
    %2242 = vmatpush1.msra.mxu0 %v2241
    %2243 = vmatprep.subr.mxu0 0.0
    %v2244 = vand.u32 %v1398, 4294901760
    %v2245 = vsub.f32 %v1398, %v2244
    %v2246 = vand.u32 %v2245, 4294901760
    %2247 = vmatpush1.msra.mxu0 %v2246
    %2248 = vmatprep.subr.mxu0 0.0
    %v2249 = vand.u32 %v1397, 4294901760
    %v2250 = vsub.f32 %v1397, %v2249
    %v2251 = vand.u32 %v2250, 4294901760
    %2252 = vmatpush1.msra.mxu0 %v2251
    %2253 = vmatprep.subr.mxu0 0.0
    %v2254 = vand.u32 %v1396, 4294901760
    %v2255 = vsub.f32 %v1396, %v2254
    %v2256 = vand.u32 %v2255, 4294901760
    %2257 = vmatpush1.msra.mxu0 %v2256
    %2258 = vmatprep.subr.mxu0 0.0
    %v2259 = vand.u32 %v1395, 4294901760
    %v2260 = vsub.f32 %v1395, %v2259
    %v2261 = vand.u32 %v2260, 4294901760
    %2262 = vmatpush1.msra.mxu0 %v2261
    %2263 = vmatprep.subr.mxu0 0.0
    %v2264 = vand.u32 %v1394, 4294901760
    %v2265 = vsub.f32 %v1394, %v2264
    %v2266 = vand.u32 %v2265, 4294901760
    %2267 = vmatpush1.msra.mxu0 %v2266
    %2268 = vmatprep.subr.mxu0 0.0
    %v2269 = vand.u32 %v1393, 4294901760
    %v2270 = vsub.f32 %v1393, %v2269
    %v2271 = vand.u32 %v2270, 4294901760
    %2272 = vmatpush1.msra.mxu0 %v2271
    %2273 = vmatprep.subr.mxu0 0.0
    %2274 = vmatpush2.msra.mxu0 0.0
    %2275 = vmatprep.subr.mxu0 0.0
    %2276 = vmatpush2.msra.mxu0 0.0
    %2277 = vmatprep.subr.mxu0 0.0
    %2278 = vmatpush2.msra.mxu0 0.0
    %2279 = vmatprep.subr.mxu0 0.0
    %2280 = vmatpush2.msra.mxu0 0.0
    %2281 = vmatprep.subr.mxu0 0.0
    %2282 = vmatpush2.msra.mxu0 0.0
    %2283 = vmatprep.subr.mxu0 0.0
    %2284 = vmatpush2.msra.mxu0 0.0
    %2285 = vmatprep.subr.mxu0 0.0
    %2286 = vmatpush2.msra.mxu0 0.0
    %2287 = vmatprep.subr.mxu0 0.0
    %2288 = vmatpush2.msra.mxu0 0.0
    %2289 = vmatprep.subr.mxu0 0.0
    %2290 = vmatpush2.msra.mxu0 0.0
    %2291 = vmatprep.subr.mxu0 0.0
    %2292 = vmatpush2.msra.mxu0 0.0
    %2293 = vmatprep.subr.mxu0 0.0
    %2294 = vmatpush2.msra.mxu0 0.0
    %2295 = vmatprep.subr.mxu0 0.0
    %2296 = vmatpush2.msra.mxu0 0.0
    %2297 = vmatprep.subr.mxu0 0.0
    %2298 = vmatpush2.msra.mxu0 0.0
    %2299 = vmatprep.subr.mxu0 0.0
    %2300 = vmatpush2.msra.mxu0 0.0
    %2301 = vmatprep.subr.mxu0 0.0
    %2302 = vmatpush2.msra.mxu0 0.0
    %2303 = vmatprep.subr.mxu0 0.0
    %2304 = vmatpush2.msra.mxu0 0.0
    %2305 = vmatprep.mubr.f32.mxu0 0.0
    %v2306 = vand.u32 %v236, 4294901760
    %2307 = vmatmul.mubr.f32.gmra.mxu0 %v2306
    %v2308 = vpop.f32.mrf.mxu0
    %v2309 = vadd.f32 %v2114, %v2308
    %v2310 = vpop.f32.mrf.mxu0
    %2311 = vmatprep.mubr.f32.mxu0 0.0
    %v2312 = vand.u32 %v239, 4294901760
    %2313 = vmatmul.mubr.f32.gmra.mxu0 %v2312
    %v2314 = vpop.f32.mrf.mxu0
    %v2315 = vadd.f32 %v2122, %v2314
    %v2316 = vpop.f32.mrf.mxu0
    %2317 = vmatprep.mubr.f32.mxu0 0.0
    %v2318 = vand.u32 %v242, 4294901760
    %2319 = vmatmul.mubr.f32.gmra.mxu0 %v2318
    %v2320 = vpop.f32.mrf.mxu0
    %v2321 = vadd.f32 %v2130, %v2320
    %v2322 = vpop.f32.mrf.mxu0
    %2323 = vmatprep.mubr.f32.mxu0 0.0
    %v2324 = vand.u32 %v245, 4294901760
    %2325 = vmatmul.mubr.f32.gmra.mxu0 %v2324
    %v2326 = vpop.f32.mrf.mxu0
    %v2327 = vadd.f32 %v2138, %v2326
    %v2328 = vpop.f32.mrf.mxu0
    %2329 = vmatprep.mubr.f32.mxu0 0.0
    %v2330 = vand.u32 %v248, 4294901760
    %2331 = vmatmul.mubr.f32.gmra.mxu0 %v2330
    %v2332 = vpop.f32.mrf.mxu0
    %v2333 = vadd.f32 %v2146, %v2332
    %v2334 = vpop.f32.mrf.mxu0
    %2335 = vmatprep.mubr.f32.mxu0 0.0
    %v2336 = vand.u32 %v251, 4294901760
    %2337 = vmatmul.mubr.f32.gmra.mxu0 %v2336
    %v2338 = vpop.f32.mrf.mxu0
    %v2339 = vadd.f32 %v2154, %v2338
    %v2340 = vpop.f32.mrf.mxu0
    %2341 = vmatprep.mubr.f32.mxu0 0.0
    %v2342 = vand.u32 %v254, 4294901760
    %2343 = vmatmul.mubr.f32.gmra.mxu0 %v2342
    %v2344 = vpop.f32.mrf.mxu0
    %v2345 = vadd.f32 %v2162, %v2344
    %v2346 = vpop.f32.mrf.mxu0
    %2347 = vmatprep.mubr.f32.mxu0 0.0
    %v2348 = vand.u32 %v257, 4294901760
    %2349 = vmatmul.mubr.f32.gmra.mxu0 %v2348
    %v2350 = vpop.f32.mrf.mxu0
    %v2351 = vadd.f32 %v2170, %v2350
    %v2352 = vpop.f32.mrf.mxu0
    %2353 = vmatprep.mubr.f32.mxu0 0.0
    %v2354 = vand.u32 %v260, 4294901760
    %2355 = vmatmul.mubr.f32.gmra.mxu0 %v2354
    %v2356 = vpop.f32.mrf.mxu0
    %v2357 = vadd.f32 %v2178, %v2356
    %v2358 = vpop.f32.mrf.mxu0
    %2359 = vmatprep.mubr.f32.mxu0 0.0
    %v2360 = vand.u32 %v263, 4294901760
    %2361 = vmatmul.mubr.f32.gmra.mxu0 %v2360
    %v2362 = vpop.f32.mrf.mxu0
    %v2363 = vadd.f32 %v2186, %v2362
    %v2364 = vpop.f32.mrf.mxu0
    %2365 = vmatprep.mubr.f32.mxu0 0.0
    %v2366 = vand.u32 %v266, 4294901760
    %2367 = vmatmul.mubr.f32.gmra.mxu0 %v2366
    %v2368 = vpop.f32.mrf.mxu0
    %v2369 = vadd.f32 %v2194, %v2368
    %v2370 = vpop.f32.mrf.mxu0
    %2371 = vmatprep.mubr.f32.mxu0 0.0
    %v2372 = vand.u32 %v269, 4294901760
    %2373 = vmatmul.mubr.f32.gmra.mxu0 %v2372
    %v2374 = vpop.f32.mrf.mxu0
    %v2375 = vadd.f32 %v2202, %v2374
    %v2376 = vpop.f32.mrf.mxu0
    %2377 = vdwg.mxu0
    %2378 = vmatprep.subr.mxu0 0.0
    %2379 = vmatpush1.msra.mxu0 0.0
    %2380 = vmatprep.subr.mxu0 0.0
    %2381 = vmatpush1.msra.mxu0 0.0
    %2382 = vmatprep.subr.mxu0 0.0
    %2383 = vmatpush1.msra.mxu0 0.0
    %2384 = vmatprep.subr.mxu0 0.0
    %2385 = vmatpush1.msra.mxu0 0.0
    %2386 = vmatprep.subr.mxu0 0.0
    %v2387 = vand.u32 %v1404, 4294901760
    %2388 = vmatpush1.msra.mxu0 %v2387
    %2389 = vmatprep.subr.mxu0 0.0
    %v2390 = vand.u32 %v1403, 4294901760
    %2391 = vmatpush1.msra.mxu0 %v2390
    %2392 = vmatprep.subr.mxu0 0.0
    %v2393 = vand.u32 %v1402, 4294901760
    %2394 = vmatpush1.msra.mxu0 %v2393
    %2395 = vmatprep.subr.mxu0 0.0
    %v2396 = vand.u32 %v1401, 4294901760
    %2397 = vmatpush1.msra.mxu0 %v2396
    %2398 = vmatprep.subr.mxu0 0.0
    %v2399 = vand.u32 %v1400, 4294901760
    %2400 = vmatpush1.msra.mxu0 %v2399
    %2401 = vmatprep.subr.mxu0 0.0
    %v2402 = vand.u32 %v1399, 4294901760
    %2403 = vmatpush1.msra.mxu0 %v2402
    %2404 = vmatprep.subr.mxu0 0.0
    %v2405 = vand.u32 %v1398, 4294901760
    %2406 = vmatpush1.msra.mxu0 %v2405
    %2407 = vmatprep.subr.mxu0 0.0
    %v2408 = vand.u32 %v1397, 4294901760
    %2409 = vmatpush1.msra.mxu0 %v2408
    %2410 = vmatprep.subr.mxu0 0.0
    %v2411 = vand.u32 %v1396, 4294901760
    %2412 = vmatpush1.msra.mxu0 %v2411
    %2413 = vmatprep.subr.mxu0 0.0
    %v2414 = vand.u32 %v1395, 4294901760
    %2415 = vmatpush1.msra.mxu0 %v2414
    %2416 = vmatprep.subr.mxu0 0.0
    %v2417 = vand.u32 %v1394, 4294901760
    %2418 = vmatpush1.msra.mxu0 %v2417
    %2419 = vmatprep.subr.mxu0 0.0
    %v2420 = vand.u32 %v1393, 4294901760
    %2421 = vmatpush1.msra.mxu0 %v2420
    %2422 = vmatprep.subr.mxu0 0.0
    %2423 = vmatpush2.msra.mxu0 0.0
    %2424 = vmatprep.subr.mxu0 0.0
    %2425 = vmatpush2.msra.mxu0 0.0
    %2426 = vmatprep.subr.mxu0 0.0
    %2427 = vmatpush2.msra.mxu0 0.0
    %2428 = vmatprep.subr.mxu0 0.0
    %2429 = vmatpush2.msra.mxu0 0.0
    %2430 = vmatprep.subr.mxu0 0.0
    %2431 = vmatpush2.msra.mxu0 0.0
    %2432 = vmatprep.subr.mxu0 0.0
    %2433 = vmatpush2.msra.mxu0 0.0
    %2434 = vmatprep.subr.mxu0 0.0
    %2435 = vmatpush2.msra.mxu0 0.0
    %2436 = vmatprep.subr.mxu0 0.0
    %2437 = vmatpush2.msra.mxu0 0.0
    %2438 = vmatprep.subr.mxu0 0.0
    %2439 = vmatpush2.msra.mxu0 0.0
    %2440 = vmatprep.subr.mxu0 0.0
    %2441 = vmatpush2.msra.mxu0 0.0
    %2442 = vmatprep.subr.mxu0 0.0
    %2443 = vmatpush2.msra.mxu0 0.0
    %2444 = vmatprep.subr.mxu0 0.0
    %2445 = vmatpush2.msra.mxu0 0.0
    %2446 = vmatprep.subr.mxu0 0.0
    %2447 = vmatpush2.msra.mxu0 0.0
    %2448 = vmatprep.subr.mxu0 0.0
    %2449 = vmatpush2.msra.mxu0 0.0
    %2450 = vmatprep.subr.mxu0 0.0
    %2451 = vmatpush2.msra.mxu0 0.0
    %2452 = vmatprep.subr.mxu0 0.0
    %2453 = vmatpush2.msra.mxu0 0.0
    %2454 = vmatprep.mubr.f32.mxu0 0.0
    %v2455 = vand.u32 %v236, 4294901760
    %2456 = vmatmul.mubr.f32.gmra.mxu0 %v2455
    %v2457 = vpop.f32.mrf.mxu0
    %v2458 = vadd.f32 %v2309, %v2457
    %v2459 = vpop.f32.mrf.mxu0
    %2460 = vmatprep.mubr.f32.mxu0 0.0
    %v2461 = vand.u32 %v239, 4294901760
    %2462 = vmatmul.mubr.f32.gmra.mxu0 %v2461
    %v2463 = vpop.f32.mrf.mxu0
    %v2464 = vadd.f32 %v2315, %v2463
    %v2465 = vpop.f32.mrf.mxu0
    %2466 = vmatprep.mubr.f32.mxu0 0.0
    %v2467 = vand.u32 %v242, 4294901760
    %2468 = vmatmul.mubr.f32.gmra.mxu0 %v2467
    %v2469 = vpop.f32.mrf.mxu0
    %v2470 = vadd.f32 %v2321, %v2469
    %v2471 = vpop.f32.mrf.mxu0
    %2472 = vmatprep.mubr.f32.mxu0 0.0
    %v2473 = vand.u32 %v245, 4294901760
    %2474 = vmatmul.mubr.f32.gmra.mxu0 %v2473
    %v2475 = vpop.f32.mrf.mxu0
    %v2476 = vadd.f32 %v2327, %v2475
    %v2477 = vpop.f32.mrf.mxu0
    %2478 = vmatprep.mubr.f32.mxu0 0.0
    %v2479 = vand.u32 %v248, 4294901760
    %2480 = vmatmul.mubr.f32.gmra.mxu0 %v2479
    %v2481 = vpop.f32.mrf.mxu0
    %v2482 = vadd.f32 %v2333, %v2481
    %v2483 = vpop.f32.mrf.mxu0
    %2484 = vmatprep.mubr.f32.mxu0 0.0
    %v2485 = vand.u32 %v251, 4294901760
    %2486 = vmatmul.mubr.f32.gmra.mxu0 %v2485
    %v2487 = vpop.f32.mrf.mxu0
    %v2488 = vadd.f32 %v2339, %v2487
    %v2489 = vpop.f32.mrf.mxu0
    %2490 = vmatprep.mubr.f32.mxu0 0.0
    %v2491 = vand.u32 %v254, 4294901760
    %2492 = vmatmul.mubr.f32.gmra.mxu0 %v2491
    %v2493 = vpop.f32.mrf.mxu0
    %v2494 = vadd.f32 %v2345, %v2493
    %v2495 = vpop.f32.mrf.mxu0
    %2496 = vmatprep.mubr.f32.mxu0 0.0
    %v2497 = vand.u32 %v257, 4294901760
    %2498 = vmatmul.mubr.f32.gmra.mxu0 %v2497
    %v2499 = vpop.f32.mrf.mxu0
    %v2500 = vadd.f32 %v2351, %v2499
    %v2501 = vpop.f32.mrf.mxu0
    %2502 = vmatprep.mubr.f32.mxu0 0.0
    %v2503 = vand.u32 %v260, 4294901760
    %2504 = vmatmul.mubr.f32.gmra.mxu0 %v2503
    %v2505 = vpop.f32.mrf.mxu0
    %v2506 = vadd.f32 %v2357, %v2505
    %v2507 = vpop.f32.mrf.mxu0
    %2508 = vmatprep.mubr.f32.mxu0 0.0
    %v2509 = vand.u32 %v263, 4294901760
    %2510 = vmatmul.mubr.f32.gmra.mxu0 %v2509
    %v2511 = vpop.f32.mrf.mxu0
    %v2512 = vadd.f32 %v2363, %v2511
    %v2513 = vpop.f32.mrf.mxu0
    %2514 = vmatprep.mubr.f32.mxu0 0.0
    %v2515 = vand.u32 %v266, 4294901760
    %2516 = vmatmul.mubr.f32.gmra.mxu0 %v2515
    %v2517 = vpop.f32.mrf.mxu0
    %v2518 = vadd.f32 %v2369, %v2517
    %v2519 = vpop.f32.mrf.mxu0
    %2520 = vmatprep.mubr.f32.mxu0 0.0
    %v2521 = vand.u32 %v269, 4294901760
    %2522 = vmatmul.mubr.f32.gmra.mxu0 %v2521
    %v2523 = vpop.f32.mrf.mxu0
    %v2524 = vadd.f32 %v2375, %v2523
    %v2525 = vpop.f32.mrf.mxu0
    %2526 = vdwg.mxu0
    %2527 = vst [vmem:[#allocation2] sm:$0xff] %v2458
    %2528 = vst [vmem:[#allocation2 + $0x8] sm:$0xff] %v2464
    %2529 = vst [vmem:[#allocation2 + $0x10] sm:$0xff] %v2470
    %2530 = vst [vmem:[#allocation2 + $0x18] sm:$0xff] %v2476
    %2531 = vst [vmem:[#allocation2 + $0x20] sm:$0xff] %v2482
    %2532 = vst [vmem:[#allocation2 + $0x28] sm:$0xff] %v2488
    %2533 = vst [vmem:[#allocation2 + $0x30] sm:$0xff] %v2494
    %2534 = vst [vmem:[#allocation2 + $0x38] sm:$0xff] %v2500
    %2535 = vst [vmem:[#allocation2 + $0x40] sm:$0xff] %v2506
    %2536 = vst [vmem:[#allocation2 + $0x48] sm:$0xff] %v2512
    %2537 = vst [vmem:[#allocation2 + $0x50] sm:$0xff] %v2518
    %2538 = vst [vmem:[#allocation2 + $0x58] sm:$0xff] %v2524
    // Predicated region
    $region18: #{tpu_custom_call.1} parent=1 // pred_check
      _
    $region19: #{tpu_custom_call.1} parent=1 // pred_check_branch
      %2540 = sbr.rel (0) target = $region21
    $region20: #{tpu_custom_call.1} parent=1 // pred_region
      %s2542 = ssub.s32 1536, 1536
      %2543 = vsyncadd [#allocation3], %s2542
      %s2544 = sshll.u32 [#allocation2], 4
      %s2545 = int_to_ptr.vmem [resolvable:$true] %s2544
      %2550 = dma.vmem_to_hbm [thread:$0]  %s2545, 1536, %s4, [#allocation3], 128, 128, 8
    $region21: #{tpu_custom_call.1} parent=1 // pred_fallthru
      _
    // Predicated region
    $region22: #{tpu_custom_call.1} parent=1 // pred_check
      _
    $region23: #{tpu_custom_call.1} parent=1 // pred_check_branch
      %2552 = sbr.rel (0) target = $region25
    $region24: #{tpu_custom_call.1} parent=1 // pred_region
      %2553 = dma.done [#allocation3], 1536
    $region25: #{tpu_custom_call.1} parent=1 // pred_fallthru
      _
    %2554 = vsyncpa [#allocation3], 1

</llo_original>
